<compile_context>
chip_gen: v6e
topology: v6e:2x2x1
jax: 0.10.0
libtpu: 0.0.40
codegen_flags: <defaults>
</compile_context>

<pallas_src>
import functools
import math

import jax
import jax.numpy as jnp
from jax import lax
from jax.experimental import pallas as pl
from jax.experimental.pallas import tpu as pltpu

# ---------------------------------------------------------------------------
# Model hyper-parameters (small, consistent with the PyTorch module defaults).
# ---------------------------------------------------------------------------
NUM_TOKENS = 64
DIM = 32
DEPTH = 2
DIM_HEAD = 16
HEADS = 2
FF_MULT = 4
FF_INNER = int(DIM * FF_MULT * 2 / 3)          # 85, matches FeedForward(dim, mult)
FF_PAD = 128                                   # FF inner padded to a full lane tile
ATTN_INNER = DIM_HEAD * HEADS                  # 32
QKV_PAD = 256                                  # [q|q_rot|k|k_rot|v] = 160 -> 256 lane-dense
LOGITS_PAD = 128                               # lane-dense logits width (64 -> 128)

RMS_EPS = float(jnp.finfo(jnp.float32).eps)    # nn.RMSNorm(eps=None) -> dtype eps
ROPE_THETA = 10000.0
NEG_MASK = -1e30                               # large finite negative (NaN-safe masking)


# ---------------------------------------------------------------------------
# GELU (exact erf when it lowers in Mosaic, tanh fallback otherwise)
# ---------------------------------------------------------------------------
def _gelu_exact(v):
    return 0.5 * v * (1.0 + lax.erf(v * (1.0 / math.sqrt(2.0))))


def _gelu_tanh(v):
    # TODO(synk): tanh-approx GELU fallback, only used if lax.erf does not lower in Mosaic.
    c = math.sqrt(2.0 / math.pi)
    return 0.5 * v * (1.0 + jnp.tanh(c * (v + 0.044715 * v * v * v)))


@functools.lru_cache(maxsize=None)
def _erf_lowers_in_pallas():
    """Probe whether lax.erf lowers inside a Mosaic TPU kernel on this JAX build."""
    def probe(x_ref, o_ref):
        o_ref[...] = lax.erf(x_ref[...])
    try:
        out = pl.pallas_call(
            probe, out_shape=jax.ShapeDtypeStruct((8, 128), jnp.float32)
        )(jnp.zeros((8, 128), jnp.float32))
        jax.block_until_ready(out)
        return True
    except Exception:  # noqa: BLE001  (any lowering/compile failure -> tanh fallback)
        return False


# ---------------------------------------------------------------------------
# Chip detection: keep a batch-parallel grid only where a 2nd TensorCore exists.
# ---------------------------------------------------------------------------
@functools.lru_cache(maxsize=None)
def _tensorcores_per_chip():
    """Best-effort TensorCores per chip: 1 on v5e/v6e, 2 on v7x / megacore."""
    try:
        info = pltpu.get_tpu_info()
        for attr in ("num_cores", "core_count", "num_tensor_cores",
                     "tensorcore_count", "cores_per_chip"):
            val = getattr(info, attr, None)
            if isinstance(val, int) and val > 0:
                return val
    except Exception:  # noqa: BLE001
        pass
    try:
        kind = jax.devices()[0].device_kind.lower()
    except Exception:  # noqa: BLE001
        return 1
    single = ("v5e", "v5 lite", "v5lite", "v6e", "v6 lite", "v6lite", "trillium")
    return 1 if any(tag in kind for tag in single) else 2


# ---------------------------------------------------------------------------
# Fused transformer kernel (one grid step = one slab: a batch row, or all rows)
# ---------------------------------------------------------------------------
def _make_transformer_kernel(exact_gelu: bool):
    gelu = _gelu_exact if exact_gelu else _gelu_tanh
    AI = ATTN_INNER

    def kernel(x_ref, cos_ref, sin_ref, mask_ref,
               attn_g_ref, w_qkv_ref, w_ao_ref,
               ff_g_ref, w_ff1_ref, w_ff2_ref,
               fin_g_ref, w_logits_ref, o_ref):
        x = x_ref[...]                            # (M, D) f32 activations for this slab
        cos = cos_ref[...]                        # (M, H*Dh)  tiled across heads
        sin = sin_ref[...]                        # (M, H*Dh)
        mask = mask_ref[...]                      # (M, M) additive causal (block-diag) mask

        def rmsnorm(v, g):                        # f32 throughout (v5e has no bf16 VPU)
            ms = jnp.mean(v * v, axis=-1, keepdims=True)
            return v * lax.rsqrt(ms + RMS_EPS) * g

        def bf(v):
            return v.astype(jnp.bfloat16)         # MXU operands in bf16, accumulate f32

        for l in range(DEPTH):
            # ------------------------------ attention ------------------------------
            normed = rmsnorm(x, attn_g_ref[l])                                   # (M, D)
            qkv = jnp.dot(bf(normed), w_qkv_ref[l],
                          preferred_element_type=jnp.float32)                    # (M, 256)
            # rope (rot matrix + q-scale folded into the packed weights): pure VPU madd,
            # applied to the whole q / k groups at once (cos/sin pre-tiled per head).
            q = qkv[:, 0 * AI:1 * AI] * cos + qkv[:, 1 * AI:2 * AI] * sin        # (M, H*Dh)
            k = qkv[:, 2 * AI:3 * AI] * cos + qkv[:, 3 * AI:4 * AI] * sin        # (M, H*Dh)
            v = qkv[:, 4 * AI:5 * AI]                                            # (M, H*Dh)
            for h in range(HEADS):
                o = h * DIM_HEAD
                # TODO(synk): for long sequences replace this (M,M) score materialization
                #             with flash-style KV tiling + online softmax.
                s = lax.dot_general(bf(q[:, o:o + DIM_HEAD]), bf(k[:, o:o + DIM_HEAD]),
                                    (((1,), (1,)), ((), ())),
                                    preferred_element_type=jnp.float32)          # (M, M)
                s = s + mask                                                     # additive mask
                s = s - jnp.max(s, axis=-1, keepdims=True)
                p = jnp.exp(s)
                p = p * pl.reciprocal(jnp.sum(p, axis=-1, keepdims=True), approx=True)
                o_h = jnp.dot(bf(p), bf(v[:, o:o + DIM_HEAD]),
                              preferred_element_type=jnp.float32)                # (M, Dh)
                # per-head out-proj accumulated into the residual (no head concat)
                x = x + jnp.dot(bf(o_h), w_ao_ref[l * HEADS + h],
                                preferred_element_type=jnp.float32)              # (M, D)

            # --------------------------- feedforward (GEGLU) ------------------------
            nb = bf(rmsnorm(x, ff_g_ref[l]))
            fused = jnp.dot(nb, w_ff1_ref[l], preferred_element_type=jnp.float32)  # (M, 256)
            a = fused[:, :FF_PAD]                                                 # 128-aligned slice
            g = fused[:, FF_PAD:]                                                 # 128-aligned slice
            hidden = a * gelu(g)                                                  # lane-dense (M, 128)
            x = x + jnp.dot(bf(hidden), w_ff2_ref[l],
                            preferred_element_type=jnp.float32)                   # FF2 + residual

        # --------------------- final norm + logits (lane-dense output) --------------------
        normed = rmsnorm(x, fin_g_ref[...])
        o_ref[...] = jnp.dot(bf(normed), w_logits_ref[...],
                             preferred_element_type=jnp.float32)                  # (M, 128)

    return kernel


def _const_index_map(ndim):
    def imap(i):
        return (0,) * ndim
    return imap


def transformer_stack(x, cos, sin, mask, p, exact_gelu):
    """One fused pallas_call for the whole transformer stack. x: (slabs, M, D) f32."""
    slabs, m, d = x.shape
    consts = (cos, sin, mask,
              p["attn_norm"], p["w_qkv"], p["w_attn_out"],
              p["ff_norm"], p["w_ff1"], p["w_ff2"],
              p["final_norm"], p["w_logits"])
    # Leading slab dim squeezed out of the kernel refs (None block dim).
    in_specs = [pl.BlockSpec((None, m, d), lambda i: (i, 0, 0))]
    in_specs += [pl.BlockSpec(c.shape, _const_index_map(c.ndim)) for c in consts]
    return pl.pallas_call(
        _make_transformer_kernel(exact_gelu),
        grid=(slabs,),
        in_specs=in_specs,
        out_specs=pl.BlockSpec((None, m, LOGITS_PAD), lambda i: (i, 0, 0)),
        out_shape=jax.ShapeDtypeStruct((slabs, m, LOGITS_PAD), jnp.float32),
        compiler_params=pltpu.CompilerParams(
            dimension_semantics=("parallel",),
            vmem_limit_bytes=32 * 1024 * 1024),
    )(x, *consts)


# ---------------------------------------------------------------------------
# Host-side tables: rotary cos/sin (tiled per head) + additive causal mask.
# Computed once, outside jit, and passed to the kernel as constants.
# ---------------------------------------------------------------------------
def build_tables(batch, seq, collapse):
    if collapse:
        pos = jnp.tile(jnp.arange(seq, dtype=jnp.float32), (batch,))       # (B*N,)
        bid = jnp.repeat(jnp.arange(batch, dtype=jnp.int32), seq)          # (B*N,)
    else:
        pos = jnp.arange(seq, dtype=jnp.float32)
        bid = jnp.zeros((seq,), jnp.int32)
    inv_freq = 1.0 / (ROPE_THETA ** (jnp.arange(0, DIM_HEAD, 2, dtype=jnp.float32) / DIM_HEAD))
    freqs = jnp.repeat(pos[:, None] * inv_freq[None, :], 2, axis=-1)        # (M, Dh) [f0,f0,f1,f1,...]
    cos = jnp.tile(jnp.cos(freqs), (1, HEADS))                              # (M, H*Dh), (h d) layout
    sin = jnp.tile(jnp.sin(freqs), (1, HEADS))
    allowed = (bid[:, None] == bid[None, :]) & (pos[None, :] <= pos[:, None])
    mask = jnp.where(allowed, 0.0, NEG_MASK).astype(jnp.float32)            # additive causal mask
    return cos, sin, mask


def rotary_pair_matrix():
    # rot[j, i]: rotate_half(t)[i] = sum_j t[j] * rot[j, i]
    #   even i: -t[i+1]   /   odd i: +t[i-1]       (interleaved-pair convention)
    idx = jnp.arange(DIM_HEAD)
    j = idx[:, None]
    i = idx[None, :]
    rot = jnp.where((i % 2 == 0) & (j == i + 1), -1.0,
                    jnp.where((i % 2 == 1) & (j == i - 1), 1.0, 0.0))
    return rot.astype(jnp.float32)


# ---------------------------------------------------------------------------
# Parameter init (deterministic, synthetic) and packing for the fused kernel
# ---------------------------------------------------------------------------
def init_params(key):
    def nrm(k, shape, std=0.02):
        return jax.random.normal(k, shape, dtype=jnp.float32) * std

    keys = jax.random.split(key, 2 + DEPTH)
    layers = []
    for i in range(DEPTH):
        lk = jax.random.split(keys[2 + i], 4)
        layers.append({
            "attn_norm": jnp.ones((DIM,), jnp.float32),
            "w_qkv": nrm(lk[0], (DIM, 3 * ATTN_INNER)),        # (qkv h d) column layout
            "w_attn_out": nrm(lk[1], (ATTN_INNER, DIM)),        # (h d) row layout
            "ff_norm": jnp.ones((DIM,), jnp.float32),
            "w_ff1": nrm(lk[2], (DIM, 2 * FF_INNER)),           # [value | gate]
            "w_ff2": nrm(lk[3], (FF_INNER, DIM)),
        })
    return {
        "emb": nrm(keys[0], (NUM_TOKENS, DIM), std=1.0),
        "final_norm": jnp.ones((DIM,), jnp.float32),
        "w_logits": nrm(keys[1], (DIM, NUM_TOKENS)),
        "layers": layers,
    }


def pack_params(params):
    """Fold rotary rot matrix + q-scale into W_qkv, lane-align QKV/FF widths,
    split the out-proj per head, pre-cast matmul weights to bf16, pad logits to 128."""
    ls = params["layers"]
    scale = DIM_HEAD ** -0.5
    rot = rotary_pair_matrix()                                   # (Dh, Dh)
    rot_all = jnp.kron(jnp.eye(HEADS, dtype=jnp.float32), rot)   # (H*Dh, H*Dh) block-diag
    AI = ATTN_INNER

    w_qkv_l, w_ao_l, w_ff1_l, w_ff2_l, an_l, fn_l = [], [], [], [], [], []
    for l in ls:
        wq = l["w_qkv"][:, :AI] * scale                          # q-scale folded in
        wk = l["w_qkv"][:, AI:2 * AI]
        wv = l["w_qkv"][:, 2 * AI:3 * AI]
        packed = jnp.zeros((DIM, QKV_PAD), jnp.float32)
        packed = packed.at[:, 0 * AI:1 * AI].set(wq)
        packed = packed.at[:, 1 * AI:2 * AI].set(wq @ rot_all)   # rotate_half(q) weights
        packed = packed.at[:, 2 * AI:3 * AI].set(wk)
        packed = packed.at[:, 3 * AI:4 * AI].set(wk @ rot_all)   # rotate_half(k) weights
        packed = packed.at[:, 4 * AI:5 * AI].set(wv)
        w_qkv_l.append(packed)

        w_ao_l.append(l["w_attn_out"].reshape(HEADS, DIM_HEAD, DIM))   # per-head blocks

        ff1 = jnp.zeros((DIM, 2 * FF_PAD), jnp.float32)          # [a pad to 128 | g pad to 128]
        ff1 = ff1.at[:, :FF_INNER].set(l["w_ff1"][:, :FF_INNER])
        ff1 = ff1.at[:, FF_PAD:FF_PAD + FF_INNER].set(l["w_ff1"][:, FF_INNER:])
        w_ff1_l.append(ff1)

        ff2 = jnp.zeros((FF_PAD, DIM), jnp.float32)              # zero rows for the padding
        ff2 = ff2.at[:FF_INNER].set(l["w_ff2"])
        w_ff2_l.append(ff2)

        an_l.append(l["attn_norm"].reshape(1, DIM))
        fn_l.append(l["ff_norm"].reshape(1, DIM))

    w_logits_pad = jnp.zeros((DIM, LOGITS_PAD), jnp.float32)
    w_logits_pad = w_logits_pad.at[:, :NUM_TOKENS].set(params["w_logits"])

    return {
        "emb": params["emb"],
        "attn_norm": jnp.stack(an_l),                                        # (DEPTH, 1, D) f32
        "w_qkv": jnp.stack(w_qkv_l).astype(jnp.bfloat16),                    # (DEPTH, D, 256)
        "w_attn_out": jnp.stack(w_ao_l).reshape(DEPTH * HEADS, DIM_HEAD, DIM)
                        .astype(jnp.bfloat16),                               # (DEPTH*H, Dh, D)
        "ff_norm": jnp.stack(fn_l),                                          # (DEPTH, 1, D) f32
        "w_ff1": jnp.stack(w_ff1_l).astype(jnp.bfloat16),                    # (DEPTH, D, 256)
        "w_ff2": jnp.stack(w_ff2_l).astype(jnp.bfloat16),                    # (DEPTH, 128, D)
        "final_norm": params["final_norm"].reshape(1, DIM),                  # (1, D) f32
        "w_logits": w_logits_pad.astype(jnp.bfloat16),                       # (D, 128)
    }


# ---------------------------------------------------------------------------
# Full forward pass
# ---------------------------------------------------------------------------
@functools.partial(jax.jit, static_argnames=("collapse", "exact_gelu"))
def transformer_forward(tokens, packed, cos, sin, mask, collapse, exact_gelu=True):
    b, n = tokens.shape
    x = packed["emb"][tokens]                      # (B, N, D) embedding gather kept in XLA
    if collapse:
        x = x.reshape(1, b * n, DIM)               # single slab on 1-TensorCore chips
    logits = transformer_stack(x, cos, sin, mask, packed, exact_gelu)   # (slabs, M, 128)
    return logits.reshape(b, n, LOGITS_PAD)[:, :, :NUM_TOKENS]          # drop lane padding


# ---------------------------------------------------------------------------
if __name__ == "__main__":
    key = jax.random.PRNGKey(0)
    pkey, tkey = jax.random.split(key)

    params = init_params(pkey)
    packed = pack_params(params)
    tokens = jax.random.randint(tkey, (2, 8), 0, NUM_TOKENS, dtype=jnp.int32)  # batch=2, seq=8

    # Collapse the batch grid on single-TC chips (v5e/v6e); keep the batch-parallel
    # grid on chips with a second TensorCore (v7x / megacore).
    collapse = _tensorcores_per_chip() < 2
    cos, sin, mask = build_tables(tokens.shape[0], tokens.shape[1], collapse)
    exact = _erf_lowers_in_pallas()

    logits = transformer_forward(tokens, packed, cos, sin, mask, collapse, exact_gelu=exact)
    jax.block_until_ready(logits)

    assert logits.shape == (2, 8, NUM_TOKENS)
    assert bool(jnp.all(jnp.isfinite(logits)))
    print("KERNEL_OK")
</pallas_src>

<mosaic_0001>
module attributes {stable_mosaic.version = 11 : i64} {
  func.func @probe(%arg0: memref<8x128xf32, #tpu.memory_space<vmem>>, %arg1: memref<8x128xf32, #tpu.memory_space<vmem>>) attributes {dimension_semantics = [], scalar_prefetch = 0 : i64, scratch_operands = 0 : i64, tpu.core_type = #tpu.core_type<tc>} {
    %c0 = arith.constant 0 : index
    %c0_0 = arith.constant 0 : index
    %0 = vector.load %arg0[%c0, %c0_0] : memref<8x128xf32, #tpu.memory_space<vmem>>, vector<8x128xf32>
    %1 = math.erf %0 : vector<8x128xf32>
    %c0_1 = arith.constant 0 : index
    %c0_2 = arith.constant 0 : index
    %2 = vector.load %arg1[%c0_1, %c0_2] : memref<8x128xf32, #tpu.memory_space<vmem>>, vector<8x128xf32>
    tpu.vector_store %arg1[%c0_1, %c0_2], %1 {strides = array<i32>} : memref<8x128xf32, #tpu.memory_space<vmem>>, vector<8x128xf32>,
    return
  }
}

module attributes {stable_mosaic.version = 11 : i64} {
  func.func @kernel(%arg0: i32, %arg1: memref<1x8x32xf32, #tpu.memory_space<vmem>>, %arg2: memref<8x32xf32, #tpu.memory_space<vmem>>, %arg3: memref<8x32xf32, #tpu.memory_space<vmem>>, %arg4: memref<8x8xf32, #tpu.memory_space<vmem>>, %arg5: memref<2x1x32xf32, #tpu.memory_space<vmem>>, %arg6: memref<2x32x256xbf16, #tpu.memory_space<vmem>>, %arg7: memref<4x16x32xbf16, #tpu.memory_space<vmem>>, %arg8: memref<2x1x32xf32, #tpu.memory_space<vmem>>, %arg9: memref<2x32x256xbf16, #tpu.memory_space<vmem>>, %arg10: memref<2x128x32xbf16, #tpu.memory_space<vmem>>, %arg11: memref<1x32xf32, #tpu.memory_space<vmem>>, %arg12: memref<32x128xbf16, #tpu.memory_space<vmem>>, %arg13: memref<1x8x128xf32, #tpu.memory_space<vmem>>) attributes {dimension_semantics = [#tpu.dimension_semantics<parallel>], iteration_bounds = array<i64: 2>, scalar_prefetch = 0 : i64, scratch_operands = 0 : i64, tpu.core_type = #tpu.core_type<tc>, window_params = [{transform_indices = @transform_0, window_bounds = array<i64: 1, 8, 32>}, {pipeline_mode = #tpu.pipeline_mode<synchronous>, transform_indices = @transform_1, window_bounds = array<i64: 8, 32>}, {pipeline_mode = #tpu.pipeline_mode<synchronous>, transform_indices = @transform_2, window_bounds = array<i64: 8, 32>}, {pipeline_mode = #tpu.pipeline_mode<synchronous>, transform_indices = @transform_3, window_bounds = array<i64: 8, 8>}, {pipeline_mode = #tpu.pipeline_mode<synchronous>, transform_indices = @transform_4, window_bounds = array<i64: 2, 1, 32>}, {pipeline_mode = #tpu.pipeline_mode<synchronous>, transform_indices = @transform_5, window_bounds = array<i64: 2, 32, 256>}, {pipeline_mode = #tpu.pipeline_mode<synchronous>, transform_indices = @transform_6, window_bounds = array<i64: 4, 16, 32>}, {pipeline_mode = #tpu.pipeline_mode<synchronous>, transform_indices = @transform_7, window_bounds = array<i64: 2, 1, 32>}, {pipeline_mode = #tpu.pipeline_mode<synchronous>, transform_indices = @transform_8, window_bounds = array<i64: 2, 32, 256>}, {pipeline_mode = #tpu.pipeline_mode<synchronous>, transform_indices = @transform_9, window_bounds = array<i64: 2, 128, 32>}, {pipeline_mode = #tpu.pipeline_mode<synchronous>, transform_indices = @transform_10, window_bounds = array<i64: 1, 32>}, {pipeline_mode = #tpu.pipeline_mode<synchronous>, transform_indices = @transform_11, window_bounds = array<i64: 32, 128>}, {transform_indices = @transform_12, window_bounds = array<i64: 1, 8, 128>}]} {
    %c0 = arith.constant 0 : index
    %c0_0 = arith.constant 0 : index
    %c0_1 = arith.constant 0 : index
    %0 = vector.load %arg1[%c0, %c0_0, %c0_1] : memref<1x8x32xf32, #tpu.memory_space<vmem>>, vector<1x8x32xf32>
    %1 = vector.shape_cast %0 : vector<1x8x32xf32> to vector<8x32xf32>
    %c0_2 = arith.constant 0 : index
    %c0_3 = arith.constant 0 : index
    %2 = vector.load %arg2[%c0_2, %c0_3] : memref<8x32xf32, #tpu.memory_space<vmem>>, vector<8x32xf32>
    %c0_4 = arith.constant 0 : index
    %c0_5 = arith.constant 0 : index
    %3 = vector.load %arg3[%c0_4, %c0_5] : memref<8x32xf32, #tpu.memory_space<vmem>>, vector<8x32xf32>
    %c0_6 = arith.constant 0 : index
    %c0_7 = arith.constant 0 : index
    %4 = vector.load %arg4[%c0_6, %c0_7] : memref<8x8xf32, #tpu.memory_space<vmem>>, vector<8x8xf32>
    %c0_8 = arith.constant 0 : index
    %c0_9 = arith.constant 0 : index
    %c0_10 = arith.constant 0 : index
    %5 = vector.load %arg5[%c0_8, %c0_9, %c0_10] : memref<2x1x32xf32, #tpu.memory_space<vmem>>, vector<1x1x32xf32>
    %6 = vector.shape_cast %5 : vector<1x1x32xf32> to vector<1x32xf32>
    %7 = arith.mulf %1, %1 : vector<8x32xf32>
    %cst = arith.constant dense<0.000000e+00> : vector<8xf32>
    %8 = vector.multi_reduction <add>, %7, %cst [1] : vector<8x32xf32> to vector<8xf32>
    %9 = vector.shape_cast %8 : vector<8xf32> to vector<8x1xf32>
    %cst_11 = arith.constant 3.200000e+01 : f32
    %10 = vector.broadcast %cst_11 : f32 to vector<8x1xf32>
    %11 = arith.divf %9, %10 : vector<8x1xf32>
    %cst_12 = arith.constant 1.1920929E-7 : f32
    %12 = vector.broadcast %cst_12 : f32 to vector<8x1xf32>
    %13 = arith.addf %11, %12 : vector<8x1xf32>
    %14 = math.rsqrt %13 : vector<8x1xf32>
    %15 = vector.broadcast %14 : vector<8x1xf32> to vector<8x32xf32>
    %16 = arith.mulf %1, %15 : vector<8x32xf32>
    %17 = vector.broadcast %6 : vector<1x32xf32> to vector<8x32xf32>
    %18 = arith.mulf %16, %17 : vector<8x32xf32>
    %19 = arith.truncf %18 : vector<8x32xf32> to vector<8x32xbf16>
    %c0_13 = arith.constant 0 : index
    %c0_14 = arith.constant 0 : index
    %c0_15 = arith.constant 0 : index
    %20 = vector.load %arg6[%c0_13, %c0_14, %c0_15] : memref<2x32x256xbf16, #tpu.memory_space<vmem>>, vector<1x32x256xbf16>
    %21 = vector.shape_cast %20 : vector<1x32x256xbf16> to vector<32x256xbf16>
    %cst_16 = arith.constant dense<0.000000e+00> : vector<8x256xf32>
    %22 = tpu.matmul %19, %21, %cst_16 {dimension_numbers = #tpu.dot_dimension_numbers<[1], [0], [0], [1], [0, 0, 1, 1], [], []>} : vector<8x32xbf16>, vector<32x256xbf16>, vector<8x256xf32> -> vector<8x256xf32>
    %23 = vector.extract_strided_slice %22 {offsets = [0, 0], sizes = [8, 32], strides = [1, 1]} : vector<8x256xf32> to vector<8x32xf32>
    %24 = arith.mulf %23, %2 : vector<8x32xf32>
    %25 = vector.extract_strided_slice %22 {offsets = [0, 32], sizes = [8, 32], strides = [1, 1]} : vector<8x256xf32> to vector<8x32xf32>
    %26 = arith.mulf %25, %3 : vector<8x32xf32>
    %27 = arith.addf %24, %26 : vector<8x32xf32>
    %28 = vector.extract_strided_slice %22 {offsets = [0, 64], sizes = [8, 32], strides = [1, 1]} : vector<8x256xf32> to vector<8x32xf32>
    %29 = arith.mulf %28, %2 : vector<8x32xf32>
    %30 = vector.extract_strided_slice %22 {offsets = [0, 96], sizes = [8, 32], strides = [1, 1]} : vector<8x256xf32> to vector<8x32xf32>
    %31 = arith.mulf %30, %3 : vector<8x32xf32>
    %32 = arith.addf %29, %31 : vector<8x32xf32>
    %33 = vector.extract_strided_slice %22 {offsets = [0, 128], sizes = [8, 32], strides = [1, 1]} : vector<8x256xf32> to vector<8x32xf32>
    %34 = vector.extract_strided_slice %27 {offsets = [0, 0], sizes = [8, 16], strides = [1, 1]} : vector<8x32xf32> to vector<8x16xf32>
    %35 = arith.truncf %34 : vector<8x16xf32> to vector<8x16xbf16>
    %36 = vector.extract_strided_slice %32 {offsets = [0, 0], sizes = [8, 16], strides = [1, 1]} : vector<8x32xf32> to vector<8x16xf32>
    %37 = arith.truncf %36 : vector<8x16xf32> to vector<8x16xbf16>
    %cst_17 = arith.constant dense<0.000000e+00> : vector<8x8xf32>
    %38 = tpu.matmul %35, %37, %cst_17 {dimension_numbers = #tpu.dot_dimension_numbers<[1], [1], [0], [0], [0, 0, 1, 0], [], []>} : vector<8x16xbf16>, vector<8x16xbf16>, vector<8x8xf32> -> vector<8x8xf32>
    %39 = arith.addf %38, %4 : vector<8x8xf32>
    %cst_18 = arith.constant dense<0xFF800000> : vector<8xf32>
    %40 = vector.multi_reduction <maximumf>, %39, %cst_18 [1] : vector<8x8xf32> to vector<8xf32>
    %41 = vector.shape_cast %40 : vector<8xf32> to vector<8x1xf32>
    %42 = vector.broadcast %41 : vector<8x1xf32> to vector<8x8xf32>
    %43 = arith.subf %39, %42 : vector<8x8xf32>
    %44 = math.exp %43 : vector<8x8xf32>
    %cst_19 = arith.constant dense<0.000000e+00> : vector<8xf32>
    %45 = vector.multi_reduction <add>, %44, %cst_19 [1] : vector<8x8xf32> to vector<8xf32>
    %46 = vector.shape_cast %45 : vector<8xf32> to vector<8x1xf32>
    %47 = tpu.reciprocal %46 {approx = true} : vector<8x1xf32> -> vector<8x1xf32>
    %48 = vector.broadcast %47 : vector<8x1xf32> to vector<8x8xf32>
    %49 = arith.mulf %44, %48 : vector<8x8xf32>
    %50 = arith.truncf %49 : vector<8x8xf32> to vector<8x8xbf16>
    %51 = vector.extract_strided_slice %33 {offsets = [0, 0], sizes = [8, 16], strides = [1, 1]} : vector<8x32xf32> to vector<8x16xf32>
    %52 = arith.truncf %51 : vector<8x16xf32> to vector<8x16xbf16>
    %cst_20 = arith.constant dense<0.000000e+00> : vector<8x16xf32>
    %53 = tpu.matmul %50, %52, %cst_20 {dimension_numbers = #tpu.dot_dimension_numbers<[1], [0], [0], [1], [0, 0, 1, 1], [], []>} : vector<8x8xbf16>, vector<8x16xbf16>, vector<8x16xf32> -> vector<8x16xf32>
    %54 = arith.truncf %53 : vector<8x16xf32> to vector<8x16xbf16>
    %c0_21 = arith.constant 0 : index
    %c0_22 = arith.constant 0 : index
    %c0_23 = arith.constant 0 : index
    %55 = vector.load %arg7[%c0_21, %c0_22, %c0_23] : memref<4x16x32xbf16, #tpu.memory_space<vmem>>, vector<1x16x32xbf16>
    %56 = vector.shape_cast %55 : vector<1x16x32xbf16> to vector<16x32xbf16>
    %cst_24 = arith.constant dense<0.000000e+00> : vector<8x32xf32>
    %57 = tpu.matmul %54, %56, %cst_24 {dimension_numbers = #tpu.dot_dimension_numbers<[1], [0], [0], [1], [0, 0, 1, 1], [], []>} : vector<8x16xbf16>, vector<16x32xbf16>, vector<8x32xf32> -> vector<8x32xf32>
    %58 = arith.addf %1, %57 : vector<8x32xf32>
    %59 = vector.extract_strided_slice %27 {offsets = [0, 16], sizes = [8, 16], strides = [1, 1]} : vector<8x32xf32> to vector<8x16xf32>
    %60 = arith.truncf %59 : vector<8x16xf32> to vector<8x16xbf16>
    %61 = vector.extract_strided_slice %32 {offsets = [0, 16], sizes = [8, 16], strides = [1, 1]} : vector<8x32xf32> to vector<8x16xf32>
    %62 = arith.truncf %61 : vector<8x16xf32> to vector<8x16xbf16>
    %cst_25 = arith.constant dense<0.000000e+00> : vector<8x8xf32>
    %63 = tpu.matmul %60, %62, %cst_25 {dimension_numbers = #tpu.dot_dimension_numbers<[1], [1], [0], [0], [0, 0, 1, 0], [], []>} : vector<8x16xbf16>, vector<8x16xbf16>, vector<8x8xf32> -> vector<8x8xf32>
    %64 = arith.addf %63, %4 : vector<8x8xf32>
    %cst_26 = arith.constant dense<0xFF800000> : vector<8xf32>
    %65 = vector.multi_reduction <maximumf>, %64, %cst_26 [1] : vector<8x8xf32> to vector<8xf32>
    %66 = vector.shape_cast %65 : vector<8xf32> to vector<8x1xf32>
    %67 = vector.broadcast %66 : vector<8x1xf32> to vector<8x8xf32>
    %68 = arith.subf %64, %67 : vector<8x8xf32>
    %69 = math.exp %68 : vector<8x8xf32>
    %cst_27 = arith.constant dense<0.000000e+00> : vector<8xf32>
    %70 = vector.multi_reduction <add>, %69, %cst_27 [1] : vector<8x8xf32> to vector<8xf32>
    %71 = vector.shape_cast %70 : vector<8xf32> to vector<8x1xf32>
    %72 = tpu.reciprocal %71 {approx = true} : vector<8x1xf32> -> vector<8x1xf32>
    %73 = vector.broadcast %72 : vector<8x1xf32> to vector<8x8xf32>
    %74 = arith.mulf %69, %73 : vector<8x8xf32>
    %75 = arith.truncf %74 : vector<8x8xf32> to vector<8x8xbf16>
    %76 = vector.extract_strided_slice %33 {offsets = [0, 16], sizes = [8, 16], strides = [1, 1]} : vector<8x32xf32> to vector<8x16xf32>
    %77 = arith.truncf %76 : vector<8x16xf32> to vector<8x16xbf16>
    %cst_28 = arith.constant dense<0.000000e+00> : vector<8x16xf32>
    %78 = tpu.matmul %75, %77, %cst_28 {dimension_numbers = #tpu.dot_dimension_numbers<[1], [0], [0], [1], [0, 0, 1, 1], [], []>} : vector<8x8xbf16>, vector<8x16xbf16>, vector<8x16xf32> -> vector<8x16xf32>
    %79 = arith.truncf %78 : vector<8x16xf32> to vector<8x16xbf16>
    %c1 = arith.constant 1 : index
    %c0_29 = arith.constant 0 : index
    %c0_30 = arith.constant 0 : index
    %80 = vector.load %arg7[%c1, %c0_29, %c0_30] : memref<4x16x32xbf16, #tpu.memory_space<vmem>>, vector<1x16x32xbf16>
    %81 = vector.shape_cast %80 : vector<1x16x32xbf16> to vector<16x32xbf16>
    %cst_31 = arith.constant dense<0.000000e+00> : vector<8x32xf32>
    %82 = tpu.matmul %79, %81, %cst_31 {dimension_numbers = #tpu.dot_dimension_numbers<[1], [0], [0], [1], [0, 0, 1, 1], [], []>} : vector<8x16xbf16>, vector<16x32xbf16>, vector<8x32xf32> -> vector<8x32xf32>
    %83 = arith.addf %58, %82 : vector<8x32xf32>
    %c0_32 = arith.constant 0 : index
    %c0_33 = arith.constant 0 : index
    %c0_34 = arith.constant 0 : index
    %84 = vector.load %arg8[%c0_32, %c0_33, %c0_34] : memref<2x1x32xf32, #tpu.memory_space<vmem>>, vector<1x1x32xf32>
    %85 = vector.shape_cast %84 : vector<1x1x32xf32> to vector<1x32xf32>
    %86 = arith.mulf %83, %83 : vector<8x32xf32>
    %cst_35 = arith.constant dense<0.000000e+00> : vector<8xf32>
    %87 = vector.multi_reduction <add>, %86, %cst_35 [1] : vector<8x32xf32> to vector<8xf32>
    %88 = vector.shape_cast %87 : vector<8xf32> to vector<8x1xf32>
    %cst_36 = arith.constant 3.200000e+01 : f32
    %89 = vector.broadcast %cst_36 : f32 to vector<8x1xf32>
    %90 = arith.divf %88, %89 : vector<8x1xf32>
    %cst_37 = arith.constant 1.1920929E-7 : f32
    %91 = vector.broadcast %cst_37 : f32 to vector<8x1xf32>
    %92 = arith.addf %90, %91 : vector<8x1xf32>
    %93 = math.rsqrt %92 : vector<8x1xf32>
    %94 = vector.broadcast %93 : vector<8x1xf32> to vector<8x32xf32>
    %95 = arith.mulf %83, %94 : vector<8x32xf32>
    %96 = vector.broadcast %85 : vector<1x32xf32> to vector<8x32xf32>
    %97 = arith.mulf %95, %96 : vector<8x32xf32>
    %98 = arith.truncf %97 : vector<8x32xf32> to vector<8x32xbf16>
    %c0_38 = arith.constant 0 : index
    %c0_39 = arith.constant 0 : index
    %c0_40 = arith.constant 0 : index
    %99 = vector.load %arg9[%c0_38, %c0_39, %c0_40] : memref<2x32x256xbf16, #tpu.memory_space<vmem>>, vector<1x32x256xbf16>
    %100 = vector.shape_cast %99 : vector<1x32x256xbf16> to vector<32x256xbf16>
    %cst_41 = arith.constant dense<0.000000e+00> : vector<8x256xf32>
    %101 = tpu.matmul %98, %100, %cst_41 {dimension_numbers = #tpu.dot_dimension_numbers<[1], [0], [0], [1], [0, 0, 1, 1], [], []>} : vector<8x32xbf16>, vector<32x256xbf16>, vector<8x256xf32> -> vector<8x256xf32>
    %102 = vector.extract_strided_slice %101 {offsets = [0, 0], sizes = [8, 128], strides = [1, 1]} : vector<8x256xf32> to vector<8x128xf32>
    %103 = vector.extract_strided_slice %101 {offsets = [0, 128], sizes = [8, 128], strides = [1, 1]} : vector<8x256xf32> to vector<8x128xf32>
    %cst_42 = arith.constant 5.000000e-01 : f32
    %104 = vector.broadcast %cst_42 : f32 to vector<8x128xf32>
    %105 = arith.mulf %104, %103 : vector<8x128xf32>
    %cst_43 = arith.constant 4.471500e-02 : f32
    %106 = vector.broadcast %cst_43 : f32 to vector<8x128xf32>
    %107 = arith.mulf %106, %103 : vector<8x128xf32>
    %108 = arith.mulf %107, %103 : vector<8x128xf32>
    %109 = arith.mulf %108, %103 : vector<8x128xf32>
    %110 = arith.addf %103, %109 : vector<8x128xf32>
    %cst_44 = arith.constant 0.797884583 : f32
    %111 = vector.broadcast %cst_44 : f32 to vector<8x128xf32>
    %112 = arith.mulf %111, %110 : vector<8x128xf32>
    %113 = math.tanh %112 : vector<8x128xf32>
    %cst_45 = arith.constant 1.000000e+00 : f32
    %114 = vector.broadcast %cst_45 : f32 to vector<8x128xf32>
    %115 = arith.addf %114, %113 : vector<8x128xf32>
    %116 = arith.mulf %105, %115 : vector<8x128xf32>
    %117 = arith.mulf %102, %116 : vector<8x128xf32>
    %118 = arith.truncf %117 : vector<8x128xf32> to vector<8x128xbf16>
    %c0_46 = arith.constant 0 : index
    %c0_47 = arith.constant 0 : index
    %c0_48 = arith.constant 0 : index
    %119 = vector.load %arg10[%c0_46, %c0_47, %c0_48] : memref<2x128x32xbf16, #tpu.memory_space<vmem>>, vector<1x128x32xbf16>
    %120 = vector.shape_cast %119 : vector<1x128x32xbf16> to vector<128x32xbf16>
    %cst_49 = arith.constant dense<0.000000e+00> : vector<8x32xf32>
    %121 = tpu.matmul %118, %120, %cst_49 {dimension_numbers = #tpu.dot_dimension_numbers<[1], [0], [0], [1], [0, 0, 1, 1], [], []>} : vector<8x128xbf16>, vector<128x32xbf16>, vector<8x32xf32> -> vector<8x32xf32>
    %122 = arith.addf %83, %121 : vector<8x32xf32>
    %c1_50 = arith.constant 1 : index
    %c0_51 = arith.constant 0 : index
    %c0_52 = arith.constant 0 : index
    %123 = vector.load %arg5[%c1_50, %c0_51, %c0_52] : memref<2x1x32xf32, #tpu.memory_space<vmem>>, vector<1x1x32xf32>
    %124 = vector.shape_cast %123 : vector<1x1x32xf32> to vector<1x32xf32>
    %125 = arith.mulf %122, %122 : vector<8x32xf32>
    %cst_53 = arith.constant dense<0.000000e+00> : vector<8xf32>
    %126 = vector.multi_reduction <add>, %125, %cst_53 [1] : vector<8x32xf32> to vector<8xf32>
    %127 = vector.shape_cast %126 : vector<8xf32> to vector<8x1xf32>
    %cst_54 = arith.constant 3.200000e+01 : f32
    %128 = vector.broadcast %cst_54 : f32 to vector<8x1xf32>
    %129 = arith.divf %127, %128 : vector<8x1xf32>
    %cst_55 = arith.constant 1.1920929E-7 : f32
    %130 = vector.broadcast %cst_55 : f32 to vector<8x1xf32>
    %131 = arith.addf %129, %130 : vector<8x1xf32>
    %132 = math.rsqrt %131 : vector<8x1xf32>
    %133 = vector.broadcast %132 : vector<8x1xf32> to vector<8x32xf32>
    %134 = arith.mulf %122, %133 : vector<8x32xf32>
    %135 = vector.broadcast %124 : vector<1x32xf32> to vector<8x32xf32>
    %136 = arith.mulf %134, %135 : vector<8x32xf32>
    %137 = arith.truncf %136 : vector<8x32xf32> to vector<8x32xbf16>
    %c1_56 = arith.constant 1 : index
    %c0_57 = arith.constant 0 : index
    %c0_58 = arith.constant 0 : index
    %138 = vector.load %arg6[%c1_56, %c0_57, %c0_58] : memref<2x32x256xbf16, #tpu.memory_space<vmem>>, vector<1x32x256xbf16>
    %139 = vector.shape_cast %138 : vector<1x32x256xbf16> to vector<32x256xbf16>
    %cst_59 = arith.constant dense<0.000000e+00> : vector<8x256xf32>
    %140 = tpu.matmul %137, %139, %cst_59 {dimension_numbers = #tpu.dot_dimension_numbers<[1], [0], [0], [1], [0, 0, 1, 1], [], []>} : vector<8x32xbf16>, vector<32x256xbf16>, vector<8x256xf32> -> vector<8x256xf32>
    %141 = vector.extract_strided_slice %140 {offsets = [0, 0], sizes = [8, 32], strides = [1, 1]} : vector<8x256xf32> to vector<8x32xf32>
    %142 = arith.mulf %141, %2 : vector<8x32xf32>
    %143 = vector.extract_strided_slice %140 {offsets = [0, 32], sizes = [8, 32], strides = [1, 1]} : vector<8x256xf32> to vector<8x32xf32>
    %144 = arith.mulf %143, %3 : vector<8x32xf32>
    %145 = arith.addf %142, %144 : vector<8x32xf32>
    %146 = vector.extract_strided_slice %140 {offsets = [0, 64], sizes = [8, 32], strides = [1, 1]} : vector<8x256xf32> to vector<8x32xf32>
    %147 = arith.mulf %146, %2 : vector<8x32xf32>
    %148 = vector.extract_strided_slice %140 {offsets = [0, 96], sizes = [8, 32], strides = [1, 1]} : vector<8x256xf32> to vector<8x32xf32>
    %149 = arith.mulf %148, %3 : vector<8x32xf32>
    %150 = arith.addf %147, %149 : vector<8x32xf32>
    %151 = vector.extract_strided_slice %140 {offsets = [0, 128], sizes = [8, 32], strides = [1, 1]} : vector<8x256xf32> to vector<8x32xf32>
    %152 = vector.extract_strided_slice %145 {offsets = [0, 0], sizes = [8, 16], strides = [1, 1]} : vector<8x32xf32> to vector<8x16xf32>
    %153 = arith.truncf %152 : vector<8x16xf32> to vector<8x16xbf16>
    %154 = vector.extract_strided_slice %150 {offsets = [0, 0], sizes = [8, 16], strides = [1, 1]} : vector<8x32xf32> to vector<8x16xf32>
    %155 = arith.truncf %154 : vector<8x16xf32> to vector<8x16xbf16>
    %cst_60 = arith.constant dense<0.000000e+00> : vector<8x8xf32>
    %156 = tpu.matmul %153, %155, %cst_60 {dimension_numbers = #tpu.dot_dimension_numbers<[1], [1], [0], [0], [0, 0, 1, 0], [], []>} : vector<8x16xbf16>, vector<8x16xbf16>, vector<8x8xf32> -> vector<8x8xf32>
    %157 = arith.addf %156, %4 : vector<8x8xf32>
    %cst_61 = arith.constant dense<0xFF800000> : vector<8xf32>
    %158 = vector.multi_reduction <maximumf>, %157, %cst_61 [1] : vector<8x8xf32> to vector<8xf32>
    %159 = vector.shape_cast %158 : vector<8xf32> to vector<8x1xf32>
    %160 = vector.broadcast %159 : vector<8x1xf32> to vector<8x8xf32>
    %161 = arith.subf %157, %160 : vector<8x8xf32>
    %162 = math.exp %161 : vector<8x8xf32>
    %cst_62 = arith.constant dense<0.000000e+00> : vector<8xf32>
    %163 = vector.multi_reduction <add>, %162, %cst_62 [1] : vector<8x8xf32> to vector<8xf32>
    %164 = vector.shape_cast %163 : vector<8xf32> to vector<8x1xf32>
    %165 = tpu.reciprocal %164 {approx = true} : vector<8x1xf32> -> vector<8x1xf32>
    %166 = vector.broadcast %165 : vector<8x1xf32> to vector<8x8xf32>
    %167 = arith.mulf %162, %166 : vector<8x8xf32>
    %168 = arith.truncf %167 : vector<8x8xf32> to vector<8x8xbf16>
    %169 = vector.extract_strided_slice %151 {offsets = [0, 0], sizes = [8, 16], strides = [1, 1]} : vector<8x32xf32> to vector<8x16xf32>
    %170 = arith.truncf %169 : vector<8x16xf32> to vector<8x16xbf16>
    %cst_63 = arith.constant dense<0.000000e+00> : vector<8x16xf32>
    %171 = tpu.matmul %168, %170, %cst_63 {dimension_numbers = #tpu.dot_dimension_numbers<[1], [0], [0], [1], [0, 0, 1, 1], [], []>} : vector<8x8xbf16>, vector<8x16xbf16>, vector<8x16xf32> -> vector<8x16xf32>
    %172 = arith.truncf %171 : vector<8x16xf32> to vector<8x16xbf16>
    %c2 = arith.constant 2 : index
    %c0_64 = arith.constant 0 : index
    %c0_65 = arith.constant 0 : index
    %173 = vector.load %arg7[%c2, %c0_64, %c0_65] : memref<4x16x32xbf16, #tpu.memory_space<vmem>>, vector<1x16x32xbf16>
    %174 = vector.shape_cast %173 : vector<1x16x32xbf16> to vector<16x32xbf16>
    %cst_66 = arith.constant dense<0.000000e+00> : vector<8x32xf32>
    %175 = tpu.matmul %172, %174, %cst_66 {dimension_numbers = #tpu.dot_dimension_numbers<[1], [0], [0], [1], [0, 0, 1, 1], [], []>} : vector<8x16xbf16>, vector<16x32xbf16>, vector<8x32xf32> -> vector<8x32xf32>
    %176 = arith.addf %122, %175 : vector<8x32xf32>
    %177 = vector.extract_strided_slice %145 {offsets = [0, 16], sizes = [8, 16], strides = [1, 1]} : vector<8x32xf32> to vector<8x16xf32>
    %178 = arith.truncf %177 : vector<8x16xf32> to vector<8x16xbf16>
    %179 = vector.extract_strided_slice %150 {offsets = [0, 16], sizes = [8, 16], strides = [1, 1]} : vector<8x32xf32> to vector<8x16xf32>
    %180 = arith.truncf %179 : vector<8x16xf32> to vector<8x16xbf16>
    %cst_67 = arith.constant dense<0.000000e+00> : vector<8x8xf32>
    %181 = tpu.matmul %178, %180, %cst_67 {dimension_numbers = #tpu.dot_dimension_numbers<[1], [1], [0], [0], [0, 0, 1, 0], [], []>} : vector<8x16xbf16>, vector<8x16xbf16>, vector<8x8xf32> -> vector<8x8xf32>
    %182 = arith.addf %181, %4 : vector<8x8xf32>
    %cst_68 = arith.constant dense<0xFF800000> : vector<8xf32>
    %183 = vector.multi_reduction <maximumf>, %182, %cst_68 [1] : vector<8x8xf32> to vector<8xf32>
    %184 = vector.shape_cast %183 : vector<8xf32> to vector<8x1xf32>
    %185 = vector.broadcast %184 : vector<8x1xf32> to vector<8x8xf32>
    %186 = arith.subf %182, %185 : vector<8x8xf32>
    %187 = math.exp %186 : vector<8x8xf32>
    %cst_69 = arith.constant dense<0.000000e+00> : vector<8xf32>
    %188 = vector.multi_reduction <add>, %187, %cst_69 [1] : vector<8x8xf32> to vector<8xf32>
    %189 = vector.shape_cast %188 : vector<8xf32> to vector<8x1xf32>
    %190 = tpu.reciprocal %189 {approx = true} : vector<8x1xf32> -> vector<8x1xf32>
    %191 = vector.broadcast %190 : vector<8x1xf32> to vector<8x8xf32>
    %192 = arith.mulf %187, %191 : vector<8x8xf32>
    %193 = arith.truncf %192 : vector<8x8xf32> to vector<8x8xbf16>
    %194 = vector.extract_strided_slice %151 {offsets = [0, 16], sizes = [8, 16], strides = [1, 1]} : vector<8x32xf32> to vector<8x16xf32>
    %195 = arith.truncf %194 : vector<8x16xf32> to vector<8x16xbf16>
    %cst_70 = arith.constant dense<0.000000e+00> : vector<8x16xf32>
    %196 = tpu.matmul %193, %195, %cst_70 {dimension_numbers = #tpu.dot_dimension_numbers<[1], [0], [0], [1], [0, 0, 1, 1], [], []>} : vector<8x8xbf16>, vector<8x16xbf16>, vector<8x16xf32> -> vector<8x16xf32>
    %197 = arith.truncf %196 : vector<8x16xf32> to vector<8x16xbf16>
    %c3 = arith.constant 3 : index
    %c0_71 = arith.constant 0 : index
    %c0_72 = arith.constant 0 : index
    %198 = vector.load %arg7[%c3, %c0_71, %c0_72] : memref<4x16x32xbf16, #tpu.memory_space<vmem>>, vector<1x16x32xbf16>
    %199 = vector.shape_cast %198 : vector<1x16x32xbf16> to vector<16x32xbf16>
    %cst_73 = arith.constant dense<0.000000e+00> : vector<8x32xf32>
    %200 = tpu.matmul %197, %199, %cst_73 {dimension_numbers = #tpu.dot_dimension_numbers<[1], [0], [0], [1], [0, 0, 1, 1], [], []>} : vector<8x16xbf16>, vector<16x32xbf16>, vector<8x32xf32> -> vector<8x32xf32>
    %201 = arith.addf %176, %200 : vector<8x32xf32>
    %c1_74 = arith.constant 1 : index
    %c0_75 = arith.constant 0 : index
    %c0_76 = arith.constant 0 : index
    %202 = vector.load %arg8[%c1_74, %c0_75, %c0_76] : memref<2x1x32xf32, #tpu.memory_space<vmem>>, vector<1x1x32xf32>
    %203 = vector.shape_cast %202 : vector<1x1x32xf32> to vector<1x32xf32>
    %204 = arith.mulf %201, %201 : vector<8x32xf32>
    %cst_77 = arith.constant dense<0.000000e+00> : vector<8xf32>
    %205 = vector.multi_reduction <add>, %204, %cst_77 [1] : vector<8x32xf32> to vector<8xf32>
    %206 = vector.shape_cast %205 : vector<8xf32> to vector<8x1xf32>
    %cst_78 = arith.constant 3.200000e+01 : f32
    %207 = vector.broadcast %cst_78 : f32 to vector<8x1xf32>
    %208 = arith.divf %206, %207 : vector<8x1xf32>
    %cst_79 = arith.constant 1.1920929E-7 : f32
    %209 = vector.broadcast %cst_79 : f32 to vector<8x1xf32>
    %210 = arith.addf %208, %209 : vector<8x1xf32>
    %211 = math.rsqrt %210 : vector<8x1xf32>
    %212 = vector.broadcast %211 : vector<8x1xf32> to vector<8x32xf32>
    %213 = arith.mulf %201, %212 : vector<8x32xf32>
    %214 = vector.broadcast %203 : vector<1x32xf32> to vector<8x32xf32>
    %215 = arith.mulf %213, %214 : vector<8x32xf32>
    %216 = arith.truncf %215 : vector<8x32xf32> to vector<8x32xbf16>
    %c1_80 = arith.constant 1 : index
    %c0_81 = arith.constant 0 : index
    %c0_82 = arith.constant 0 : index
    %217 = vector.load %arg9[%c1_80, %c0_81, %c0_82] : memref<2x32x256xbf16, #tpu.memory_space<vmem>>, vector<1x32x256xbf16>
    %218 = vector.shape_cast %217 : vector<1x32x256xbf16> to vector<32x256xbf16>
    %cst_83 = arith.constant dense<0.000000e+00> : vector<8x256xf32>
    %219 = tpu.matmul %216, %218, %cst_83 {dimension_numbers = #tpu.dot_dimension_numbers<[1], [0], [0], [1], [0, 0, 1, 1], [], []>} : vector<8x32xbf16>, vector<32x256xbf16>, vector<8x256xf32> -> vector<8x256xf32>
    %220 = vector.extract_strided_slice %219 {offsets = [0, 0], sizes = [8, 128], strides = [1, 1]} : vector<8x256xf32> to vector<8x128xf32>
    %221 = vector.extract_strided_slice %219 {offsets = [0, 128], sizes = [8, 128], strides = [1, 1]} : vector<8x256xf32> to vector<8x128xf32>
    %cst_84 = arith.constant 5.000000e-01 : f32
    %222 = vector.broadcast %cst_84 : f32 to vector<8x128xf32>
    %223 = arith.mulf %222, %221 : vector<8x128xf32>
    %cst_85 = arith.constant 4.471500e-02 : f32
    %224 = vector.broadcast %cst_85 : f32 to vector<8x128xf32>
    %225 = arith.mulf %224, %221 : vector<8x128xf32>
    %226 = arith.mulf %225, %221 : vector<8x128xf32>
    %227 = arith.mulf %226, %221 : vector<8x128xf32>
    %228 = arith.addf %221, %227 : vector<8x128xf32>
    %cst_86 = arith.constant 0.797884583 : f32
    %229 = vector.broadcast %cst_86 : f32 to vector<8x128xf32>
    %230 = arith.mulf %229, %228 : vector<8x128xf32>
    %231 = math.tanh %230 : vector<8x128xf32>
    %cst_87 = arith.constant 1.000000e+00 : f32
    %232 = vector.broadcast %cst_87 : f32 to vector<8x128xf32>
    %233 = arith.addf %232, %231 : vector<8x128xf32>
    %234 = arith.mulf %223, %233 : vector<8x128xf32>
    %235 = arith.mulf %220, %234 : vector<8x128xf32>
    %236 = arith.truncf %235 : vector<8x128xf32> to vector<8x128xbf16>
    %c1_88 = arith.constant 1 : index
    %c0_89 = arith.constant 0 : index
    %c0_90 = arith.constant 0 : index
    %237 = vector.load %arg10[%c1_88, %c0_89, %c0_90] : memref<2x128x32xbf16, #tpu.memory_space<vmem>>, vector<1x128x32xbf16>
    %238 = vector.shape_cast %237 : vector<1x128x32xbf16> to vector<128x32xbf16>
    %cst_91 = arith.constant dense<0.000000e+00> : vector<8x32xf32>
    %239 = tpu.matmul %236, %238, %cst_91 {dimension_numbers = #tpu.dot_dimension_numbers<[1], [0], [0], [1], [0, 0, 1, 1], [], []>} : vector<8x128xbf16>, vector<128x32xbf16>, vector<8x32xf32> -> vector<8x32xf32>
    %240 = arith.addf %201, %239 : vector<8x32xf32>
    %c0_92 = arith.constant 0 : index
    %c0_93 = arith.constant 0 : index
    %241 = vector.load %arg11[%c0_92, %c0_93] : memref<1x32xf32, #tpu.memory_space<vmem>>, vector<1x32xf32>
    %242 = arith.mulf %240, %240 : vector<8x32xf32>
    %cst_94 = arith.constant dense<0.000000e+00> : vector<8xf32>
    %243 = vector.multi_reduction <add>, %242, %cst_94 [1] : vector<8x32xf32> to vector<8xf32>
    %244 = vector.shape_cast %243 : vector<8xf32> to vector<8x1xf32>
    %cst_95 = arith.constant 3.200000e+01 : f32
    %245 = vector.broadcast %cst_95 : f32 to vector<8x1xf32>
    %246 = arith.divf %244, %245 : vector<8x1xf32>
    %cst_96 = arith.constant 1.1920929E-7 : f32
    %247 = vector.broadcast %cst_96 : f32 to vector<8x1xf32>
    %248 = arith.addf %246, %247 : vector<8x1xf32>
    %249 = math.rsqrt %248 : vector<8x1xf32>
    %250 = vector.broadcast %249 : vector<8x1xf32> to vector<8x32xf32>
    %251 = arith.mulf %240, %250 : vector<8x32xf32>
    %252 = vector.broadcast %241 : vector<1x32xf32> to vector<8x32xf32>
    %253 = arith.mulf %251, %252 : vector<8x32xf32>
    %254 = arith.truncf %253 : vector<8x32xf32> to vector<8x32xbf16>
    %c0_97 = arith.constant 0 : index
    %c0_98 = arith.constant 0 : index
    %255 = vector.load %arg12[%c0_97, %c0_98] : memref<32x128xbf16, #tpu.memory_space<vmem>>, vector<32x128xbf16>
    %cst_99 = arith.constant dense<0.000000e+00> : vector<8x128xf32>
    %256 = tpu.matmul %254, %255, %cst_99 {dimension_numbers = #tpu.dot_dimension_numbers<[1], [0], [0], [1], [0, 0, 1, 1], [], []>} : vector<8x32xbf16>, vector<32x128xbf16>, vector<8x128xf32> -> vector<8x128xf32>
    %c0_100 = arith.constant 0 : index
    %c0_101 = arith.constant 0 : index
    %c0_102 = arith.constant 0 : index
    %257 = vector.load %arg13[%c0_100, %c0_101, %c0_102] : memref<1x8x128xf32, #tpu.memory_space<vmem>>, vector<1x8x128xf32>
    %258 = vector.shape_cast %257 : vector<1x8x128xf32> to vector<8x128xf32>
    %259 = vector.shape_cast %256 : vector<8x128xf32> to vector<1x8x128xf32>
    tpu.vector_store %arg13[%c0_100, %c0_101, %c0_102], %259 {strides = array<i32>} : memref<1x8x128xf32, #tpu.memory_space<vmem>>, vector<1x8x128xf32>,
    return
  }
  func.func @transform_0(%arg0: i32) -> (i32, i32, i32) {
    %c0_i32 = arith.constant 0 : i32
    %c0_i32_0 = arith.constant 0 : i32
    %c0_i32_1 = arith.constant 0 : i32
    return %arg0, %c0_i32, %c0_i32_0 : i32, i32, i32
  }
  func.func @transform_1(%arg0: i32) -> (i32, i32) {
    %c0_i32 = arith.constant 0 : i32
    %c0_i32_0 = arith.constant 0 : i32
    %c0_i32_1 = arith.constant 0 : i32
    return %c0_i32, %c0_i32_0 : i32, i32
  }
  func.func @transform_2(%arg0: i32) -> (i32, i32) {
    %c0_i32 = arith.constant 0 : i32
    %c0_i32_0 = arith.constant 0 : i32
    %c0_i32_1 = arith.constant 0 : i32
    return %c0_i32, %c0_i32_0 : i32, i32
  }
  func.func @transform_3(%arg0: i32) -> (i32, i32) {
    %c0_i32 = arith.constant 0 : i32
    %c0_i32_0 = arith.constant 0 : i32
    %c0_i32_1 = arith.constant 0 : i32
    return %c0_i32, %c0_i32_0 : i32, i32
  }
  func.func @transform_4(%arg0: i32) -> (i32, i32, i32) {
    %c0_i32 = arith.constant 0 : i32
    %c0_i32_0 = arith.constant 0 : i32
    %c0_i32_1 = arith.constant 0 : i32
    %c0_i32_2 = arith.constant 0 : i32
    return %c0_i32, %c0_i32_0, %c0_i32_1 : i32, i32, i32
  }
  func.func @transform_5(%arg0: i32) -> (i32, i32, i32) {
    %c0_i32 = arith.constant 0 : i32
    %c0_i32_0 = arith.constant 0 : i32
    %c0_i32_1 = arith.constant 0 : i32
    %c0_i32_2 = arith.constant 0 : i32
    return %c0_i32, %c0_i32_0, %c0_i32_1 : i32, i32, i32
  }
  func.func @transform_6(%arg0: i32) -> (i32, i32, i32) {
    %c0_i32 = arith.constant 0 : i32
    %c0_i32_0 = arith.constant 0 : i32
    %c0_i32_1 = arith.constant 0 : i32
    %c0_i32_2 = arith.constant 0 : i32
    return %c0_i32, %c0_i32_0, %c0_i32_1 : i32, i32, i32
  }
  func.func @transform_7(%arg0: i32) -> (i32, i32, i32) {
    %c0_i32 = arith.constant 0 : i32
    %c0_i32_0 = arith.constant 0 : i32
    %c0_i32_1 = arith.constant 0 : i32
    %c0_i32_2 = arith.constant 0 : i32
    return %c0_i32, %c0_i32_0, %c0_i32_1 : i32, i32, i32
  }
  func.func @transform_8(%arg0: i32) -> (i32, i32, i32) {
    %c0_i32 = arith.constant 0 : i32
    %c0_i32_0 = arith.constant 0 : i32
    %c0_i32_1 = arith.constant 0 : i32
    %c0_i32_2 = arith.constant 0 : i32
    return %c0_i32, %c0_i32_0, %c0_i32_1 : i32, i32, i32
  }
  func.func @transform_9(%arg0: i32) -> (i32, i32, i32) {
    %c0_i32 = arith.constant 0 : i32
    %c0_i32_0 = arith.constant 0 : i32
    %c0_i32_1 = arith.constant 0 : i32
    %c0_i32_2 = arith.constant 0 : i32
    return %c0_i32, %c0_i32_0, %c0_i32_1 : i32, i32, i32
  }
  func.func @transform_10(%arg0: i32) -> (i32, i32) {
    %c0_i32 = arith.constant 0 : i32
    %c0_i32_0 = arith.constant 0 : i32
    %c0_i32_1 = arith.constant 0 : i32
    return %c0_i32, %c0_i32_0 : i32, i32
  }
  func.func @transform_11(%arg0: i32) -> (i32, i32) {
    %c0_i32 = arith.constant 0 : i32
    %c0_i32_0 = arith.constant 0 : i32
    %c0_i32_1 = arith.constant 0 : i32
    return %c0_i32, %c0_i32_0 : i32, i32
  }
  func.func @transform_12(%arg0: i32) -> (i32, i32, i32) {
    %c0_i32 = arith.constant 0 : i32
    %c0_i32_0 = arith.constant 0 : i32
    %c0_i32_1 = arith.constant 0 : i32
    return %arg0, %c0_i32, %c0_i32_0 : i32, i32, i32
  }
}

</mosaic_0001>

<llo_original>
// kernel: tpu_custom_call.1
$region0: #{tpu_custom_call.1}
  #allocation0 [shape = 'u32[]', space=smem, size = 0x4, offset = 0x4, fixed_abs, tag = 'smem constant byte address 0x4 - core index']
  #allocation1 [shape = 'u32[144,128]{1,0:T(1,128)}', space=vmem, size = 0x12000, scoped, tag = 'internal scratch']
  %s0 = inlined_call_operand.hbm [shape: f32[8,128], index: 0, kind: input, shape index: {}]
  %s1 = inlined_call_operand.hbm [shape: f32[8,128], index: 1, kind: output, shape index: {}]
  %s2 = sld [smem:[#allocation0]]
  $region18: #{tpu_custom_call.1} parent=0
    _
  %s4 = ssub.s32 1, %s2
  %s5 = scalar_select 0, %s4, %s2
  $region1: #{tpu_custom_call.1} parent=0
    #allocation2 [shape = 'u8[4096]{0}', space=vmem, size = 0x1000, scoped, tag = 'input window, operand 0, single buffered']
    #allocation3 [shape = 's32[1]{0}', space=sflag, size = 0x4, scoped, tag = 'scoped memory for tpu_custom_call.1']
    #allocation4 [shape = 's32[1]{0}', space=sflag, size = 0x4, scoped, tag = 'scoped memory for tpu_custom_call.1']
    #allocation5 [shape = 'u8[4096]{0}', space=vmem, size = 0x1000, scoped, tag = 'output window, operand 0, single buffered']
    %6 = vsyncpa [#allocation3], 0
    %7 = vsyncpa [#allocation4], 0
    // Predicated region
    $region2: #{tpu_custom_call.1} parent=1 // pred_check
      _
    $region3: #{tpu_custom_call.1} parent=1 // pred_check_branch
      %9 = sbr.rel (0) target = $region5
    $region4: #{tpu_custom_call.1} parent=1 // pred_region
      %s11 = ssub.s32 128, 128
      %12 = vsyncadd [#allocation3], %s11
      %s14 = sshll.u32 [#allocation2], 4
      %s15 = int_to_ptr.vmem [resolvable:$true] %s14
      %17 = dma.hbm_to_vmem [thread:$0]  %s0, 128, %s15, [#allocation3]
    $region5: #{tpu_custom_call.1} parent=1 // pred_fallthru
      _
    // Predicated region
    $region6: #{tpu_custom_call.1} parent=1 // pred_check
      _
    $region7: #{tpu_custom_call.1} parent=1 // pred_check_branch
      %19 = sbr.rel (0) target = $region9
    $region8: #{tpu_custom_call.1} parent=1 // pred_region
      %20 = dma.done [#allocation3], 128
    $region9: #{tpu_custom_call.1} parent=1 // pred_fallthru
      _
    %v21 = vld [vmem:[#allocation2] sm:$0xff]
    %v22 = verf.f32.pop %v21
    %23 = vst [vmem:[#allocation5] sm:$0xff] %v22
    // Predicated region
    $region10: #{tpu_custom_call.1} parent=1 // pred_check
      _
    $region11: #{tpu_custom_call.1} parent=1 // pred_check_branch
      %25 = sbr.rel (0) target = $region13
    $region12: #{tpu_custom_call.1} parent=1 // pred_region
      %s27 = ssub.s32 128, 128
      %28 = vsyncadd [#allocation4], %s27
      %s30 = sshll.u32 [#allocation5], 4
      %s31 = int_to_ptr.vmem [resolvable:$true] %s30
      %33 = dma.vmem_to_hbm [thread:$0]  %s31, 128, %s1, [#allocation4]
    $region13: #{tpu_custom_call.1} parent=1 // pred_fallthru
      _
    // Predicated region
    $region14: #{tpu_custom_call.1} parent=1 // pred_check
      _
    $region15: #{tpu_custom_call.1} parent=1 // pred_check_branch
      %35 = sbr.rel (0) target = $region17
    $region16: #{tpu_custom_call.1} parent=1 // pred_region
      %36 = dma.done [#allocation4], 128
    $region17: #{tpu_custom_call.1} parent=1 // pred_fallthru
      _
    %37 = vsyncpa [#allocation3], 1
    %38 = vsyncpa [#allocation4], 1

// kernel: transformer_forward.1
$region0: #{transformer_forward.1}
  #allocation0 [shape = 'u32[]', space=smem, size = 0x4, offset = 0x4, fixed_abs, tag = 'smem constant byte address 0x4 - core index']
  #allocation1 [shape = 'u32[144,128]{1,0:T(1,128)}', space=vmem, size = 0x12000, scoped, tag = 'internal scratch']
  %s0 = inlined_call_operand.vmem [shape: f32[2,8,32], index: 0, kind: input, shape index: {}]
  %s1 = inlined_call_operand.vmem [shape: f32[8,32], index: 1, kind: input, shape index: {}]
  %s2 = inlined_call_operand.vmem [shape: f32[8,32], index: 2, kind: input, shape index: {}]
  %s3 = inlined_call_operand.vmem [shape: f32[8,8], index: 3, kind: input, shape index: {}]
  %s4 = inlined_call_operand.vmem [shape: f32[2,1,32], index: 4, kind: input, shape index: {}]
  %s5 = inlined_call_operand.vmem [shape: bf16[2,32,256], index: 5, kind: input, shape index: {}]
  %s6 = inlined_call_operand.vmem [shape: bf16[4,16,32], index: 6, kind: input, shape index: {}]
  %s7 = inlined_call_operand.vmem [shape: f32[2,1,32], index: 7, kind: input, shape index: {}]
  %s8 = inlined_call_operand.vmem [shape: bf16[2,32,256], index: 8, kind: input, shape index: {}]
  %s9 = inlined_call_operand.vmem [shape: bf16[2,128,32], index: 9, kind: input, shape index: {}]
  %s10 = inlined_call_operand.vmem [shape: f32[1,32], index: 10, kind: input, shape index: {}]
  %s11 = inlined_call_operand.vmem [shape: bf16[32,128], index: 11, kind: input, shape index: {}]
  %s12 = inlined_call_operand.hbm [shape: f32[2,8,128], index: 12, kind: output, shape index: {}]
  %s13 = sld [smem:[#allocation0]]
  $region81: #{transformer_forward.1} parent=0
    _
  %s15 = ssub.s32 1, %s13
  %s16 = scalar_select 0, %s15, %s13
  $region1: #{transformer_forward.1} parent=0
    #allocation2 [shape = 'u8[8192]{0}', space=vmem, size = 0x2000, scoped, tag = 'output window, operand 0']
    #allocation3 [shape = 's32[2]{0}', space=sflag, size = 0x8, scoped, tag = 'scoped memory for transformer_forward.1']
    %17 = vsyncpa [#allocation3], 0
    %s18 = scalar_lea.sflag [#allocation3], 1
    %19 = vsyncpa %s18, 0
    loop: start=0, step=1, limit=4
    $region2: #{transformer_forward.1} parent=1 // loop_pre_header
      _
    $region3: #{transformer_forward.1} parent=1 // loop_header
      %s21 = sphi 0, %s25
      %p22 = scmp.ge.s32.totalorder %s21, 4
      %s31 = sphi 0, %s33
      %s34 = sphi 0, %s31
      %s35 = sphi 0, %s34
      %s51 = sphi 0, %s35
      %s55 = sphi 0, %s55
      %s57 = sphi 0, %s55
      %s58 = sphi 0, %s57
      %s72 = sphi 0, %s58
      %s76 = sphi 0, %s76
      %s78 = sphi 0, %s76
      %s79 = sphi 0, %s78
      %s93 = sphi 0, %s79
      %s97 = sphi 0, %s97
      %s99 = sphi 0, %s97
      %s100 = sphi 0, %s99
      %s114 = sphi 0, %s100
      %s118 = sphi 0, %s118
      %s120 = sphi 0, %s118
      %s121 = sphi 0, %s120
      %s135 = sphi 0, %s121
      %s139 = sphi 0, %s139
      %s141 = sphi 0, %s139
      %s142 = sphi 0, %s141
      %s156 = sphi 0, %s142
      %s160 = sphi 0, %s160
      %s162 = sphi 0, %s160
      %s163 = sphi 0, %s162
      %s177 = sphi 0, %s163
      %s181 = sphi 0, %s181
      %s183 = sphi 0, %s181
      %s184 = sphi 0, %s183
      %s198 = sphi 0, %s184
      %s202 = sphi 0, %s202
      %s204 = sphi 0, %s202
      %s205 = sphi 0, %s204
      %s219 = sphi 0, %s205
      %s223 = sphi 0, %s223
      %s225 = sphi 0, %s223
      %s226 = sphi 0, %s225
      %s240 = sphi 0, %s226
      %s244 = sphi 0, %s244
      %s246 = sphi 0, %s244
      %s247 = sphi 0, %s246
      %s261 = sphi 0, %s247
      %s265 = sphi 0, %s265
      %s267 = sphi 0, %s265
      %s268 = sphi 0, %s267
      %s282 = sphi 0, %s268
      %s288 = sphi 0, %s290
      %s291 = sphi 0, %s288
      %s292 = sphi 0, %s291
      %s308 = sphi 0, %s292
    $region4: #{transformer_forward.1} parent=1 // loop_header_branch
      %24 = sbr.rel (%p22) target = $region8
    $region5: #{transformer_forward.1} parent=1 // loop_body
      %s26 = ssub.s32 %s21, 1
      %s27 = ssub.s32 %s21, 2
      %s28 = sadd.s32 %s21, 1
      %s29 = ssub.s32 %s21, %s28
      %p30 = scmp.eq.s32.totalorder %s29, 0
      %s32 = sadd.s32 %s31, 1
      %s33 = scalar_select %p30, %s31, %s32
      %p36 = pneg %p30
      %p37 = scmp.eq.s32.totalorder %s21, 1
      %p38 = por %p36, %p37
      %p39 = scmp.ne.s32.totalorder %s31, %s34
      %p40 = scmp.eq.s32.totalorder %s21, 0
      %p41 = por %p39, %p40
      %p42 = scmp.ne.s32.totalorder %s31, %s34
      %p43 = scmp.eq.s32.totalorder %s26, 1
      %p44 = por %p42, %p43
      %p45 = scmp.ne.s32.totalorder %s34, %s35
      %p46 = scmp.eq.s32.totalorder %s26, 0
      %p47 = por %p45, %p46
      %p48 = scmp.ne.s32.totalorder %s34, %s35
      %p49 = scmp.eq.s32.totalorder %s27, 1
      %p50 = por %p48, %p49
      %p52 = scmp.ne.s32.totalorder %s35, %s51
      %p53 = scmp.eq.s32.totalorder %s27, 0
      %p54 = por %p52, %p53
      %s56 = sadd.s32 %s55, 1
      %p59 = scmp.eq.s32.totalorder %s21, 1
      %p60 = scmp.ne.s32.totalorder %s55, %s57
      %p61 = scmp.eq.s32.totalorder %s21, 0
      %p62 = por %p60, %p61
      %p63 = scmp.ne.s32.totalorder %s55, %s57
      %p64 = scmp.eq.s32.totalorder %s26, 1
      %p65 = por %p63, %p64
      %p66 = scmp.ne.s32.totalorder %s57, %s58
      %p67 = scmp.eq.s32.totalorder %s26, 0
      %p68 = por %p66, %p67
      %p69 = scmp.ne.s32.totalorder %s57, %s58
      %p70 = scmp.eq.s32.totalorder %s27, 1
      %p71 = por %p69, %p70
      %p73 = scmp.ne.s32.totalorder %s58, %s72
      %p74 = scmp.eq.s32.totalorder %s27, 0
      %p75 = por %p73, %p74
      %s77 = sadd.s32 %s76, 1
      %p80 = scmp.eq.s32.totalorder %s21, 1
      %p81 = scmp.ne.s32.totalorder %s76, %s78
      %p82 = scmp.eq.s32.totalorder %s21, 0
      %p83 = por %p81, %p82
      %p84 = scmp.ne.s32.totalorder %s76, %s78
      %p85 = scmp.eq.s32.totalorder %s26, 1
      %p86 = por %p84, %p85
      %p87 = scmp.ne.s32.totalorder %s78, %s79
      %p88 = scmp.eq.s32.totalorder %s26, 0
      %p89 = por %p87, %p88
      %p90 = scmp.ne.s32.totalorder %s78, %s79
      %p91 = scmp.eq.s32.totalorder %s27, 1
      %p92 = por %p90, %p91
      %p94 = scmp.ne.s32.totalorder %s79, %s93
      %p95 = scmp.eq.s32.totalorder %s27, 0
      %p96 = por %p94, %p95
      %s98 = sadd.s32 %s97, 1
      %p101 = scmp.eq.s32.totalorder %s21, 1
      %p102 = scmp.ne.s32.totalorder %s97, %s99
      %p103 = scmp.eq.s32.totalorder %s21, 0
      %p104 = por %p102, %p103
      %p105 = scmp.ne.s32.totalorder %s97, %s99
      %p106 = scmp.eq.s32.totalorder %s26, 1
      %p107 = por %p105, %p106
      %p108 = scmp.ne.s32.totalorder %s99, %s100
      %p109 = scmp.eq.s32.totalorder %s26, 0
      %p110 = por %p108, %p109
      %p111 = scmp.ne.s32.totalorder %s99, %s100
      %p112 = scmp.eq.s32.totalorder %s27, 1
      %p113 = por %p111, %p112
      %p115 = scmp.ne.s32.totalorder %s100, %s114
      %p116 = scmp.eq.s32.totalorder %s27, 0
      %p117 = por %p115, %p116
      %s119 = sadd.s32 %s118, 1
      %p122 = scmp.eq.s32.totalorder %s21, 1
      %p123 = scmp.ne.s32.totalorder %s118, %s120
      %p124 = scmp.eq.s32.totalorder %s21, 0
      %p125 = por %p123, %p124
      %p126 = scmp.ne.s32.totalorder %s118, %s120
      %p127 = scmp.eq.s32.totalorder %s26, 1
      %p128 = por %p126, %p127
      %p129 = scmp.ne.s32.totalorder %s120, %s121
      %p130 = scmp.eq.s32.totalorder %s26, 0
      %p131 = por %p129, %p130
      %p132 = scmp.ne.s32.totalorder %s120, %s121
      %p133 = scmp.eq.s32.totalorder %s27, 1
      %p134 = por %p132, %p133
      %p136 = scmp.ne.s32.totalorder %s121, %s135
      %p137 = scmp.eq.s32.totalorder %s27, 0
      %p138 = por %p136, %p137
      %s140 = sadd.s32 %s139, 1
      %p143 = scmp.eq.s32.totalorder %s21, 1
      %p144 = scmp.ne.s32.totalorder %s139, %s141
      %p145 = scmp.eq.s32.totalorder %s21, 0
      %p146 = por %p144, %p145
      %p147 = scmp.ne.s32.totalorder %s139, %s141
      %p148 = scmp.eq.s32.totalorder %s26, 1
      %p149 = por %p147, %p148
      %p150 = scmp.ne.s32.totalorder %s141, %s142
      %p151 = scmp.eq.s32.totalorder %s26, 0
      %p152 = por %p150, %p151
      %p153 = scmp.ne.s32.totalorder %s141, %s142
      %p154 = scmp.eq.s32.totalorder %s27, 1
      %p155 = por %p153, %p154
      %p157 = scmp.ne.s32.totalorder %s142, %s156
      %p158 = scmp.eq.s32.totalorder %s27, 0
      %p159 = por %p157, %p158
      %s161 = sadd.s32 %s160, 1
      %p164 = scmp.eq.s32.totalorder %s21, 1
      %p165 = scmp.ne.s32.totalorder %s160, %s162
      %p166 = scmp.eq.s32.totalorder %s21, 0
      %p167 = por %p165, %p166
      %p168 = scmp.ne.s32.totalorder %s160, %s162
      %p169 = scmp.eq.s32.totalorder %s26, 1
      %p170 = por %p168, %p169
      %p171 = scmp.ne.s32.totalorder %s162, %s163
      %p172 = scmp.eq.s32.totalorder %s26, 0
      %p173 = por %p171, %p172
      %p174 = scmp.ne.s32.totalorder %s162, %s163
      %p175 = scmp.eq.s32.totalorder %s27, 1
      %p176 = por %p174, %p175
      %p178 = scmp.ne.s32.totalorder %s163, %s177
      %p179 = scmp.eq.s32.totalorder %s27, 0
      %p180 = por %p178, %p179
      %s182 = sadd.s32 %s181, 1
      %p185 = scmp.eq.s32.totalorder %s21, 1
      %p186 = scmp.ne.s32.totalorder %s181, %s183
      %p187 = scmp.eq.s32.totalorder %s21, 0
      %p188 = por %p186, %p187
      %p189 = scmp.ne.s32.totalorder %s181, %s183
      %p190 = scmp.eq.s32.totalorder %s26, 1
      %p191 = por %p189, %p190
      %p192 = scmp.ne.s32.totalorder %s183, %s184
      %p193 = scmp.eq.s32.totalorder %s26, 0
      %p194 = por %p192, %p193
      %p195 = scmp.ne.s32.totalorder %s183, %s184
      %p196 = scmp.eq.s32.totalorder %s27, 1
      %p197 = por %p195, %p196
      %p199 = scmp.ne.s32.totalorder %s184, %s198
      %p200 = scmp.eq.s32.totalorder %s27, 0
      %p201 = por %p199, %p200
      %s203 = sadd.s32 %s202, 1
      %p206 = scmp.eq.s32.totalorder %s21, 1
      %p207 = scmp.ne.s32.totalorder %s202, %s204
      %p208 = scmp.eq.s32.totalorder %s21, 0
      %p209 = por %p207, %p208
      %p210 = scmp.ne.s32.totalorder %s202, %s204
      %p211 = scmp.eq.s32.totalorder %s26, 1
      %p212 = por %p210, %p211
      %p213 = scmp.ne.s32.totalorder %s204, %s205
      %p214 = scmp.eq.s32.totalorder %s26, 0
      %p215 = por %p213, %p214
      %p216 = scmp.ne.s32.totalorder %s204, %s205
      %p217 = scmp.eq.s32.totalorder %s27, 1
      %p218 = por %p216, %p217
      %p220 = scmp.ne.s32.totalorder %s205, %s219
      %p221 = scmp.eq.s32.totalorder %s27, 0
      %p222 = por %p220, %p221
      %s224 = sadd.s32 %s223, 1
      %p227 = scmp.eq.s32.totalorder %s21, 1
      %p228 = scmp.ne.s32.totalorder %s223, %s225
      %p229 = scmp.eq.s32.totalorder %s21, 0
      %p230 = por %p228, %p229
      %p231 = scmp.ne.s32.totalorder %s223, %s225
      %p232 = scmp.eq.s32.totalorder %s26, 1
      %p233 = por %p231, %p232
      %p234 = scmp.ne.s32.totalorder %s225, %s226
      %p235 = scmp.eq.s32.totalorder %s26, 0
      %p236 = por %p234, %p235
      %p237 = scmp.ne.s32.totalorder %s225, %s226
      %p238 = scmp.eq.s32.totalorder %s27, 1
      %p239 = por %p237, %p238
      %p241 = scmp.ne.s32.totalorder %s226, %s240
      %p242 = scmp.eq.s32.totalorder %s27, 0
      %p243 = por %p241, %p242
      %s245 = sadd.s32 %s244, 1
      %p248 = scmp.eq.s32.totalorder %s21, 1
      %p249 = scmp.ne.s32.totalorder %s244, %s246
      %p250 = scmp.eq.s32.totalorder %s21, 0
      %p251 = por %p249, %p250
      %p252 = scmp.ne.s32.totalorder %s244, %s246
      %p253 = scmp.eq.s32.totalorder %s26, 1
      %p254 = por %p252, %p253
      %p255 = scmp.ne.s32.totalorder %s246, %s247
      %p256 = scmp.eq.s32.totalorder %s26, 0
      %p257 = por %p255, %p256
      %p258 = scmp.ne.s32.totalorder %s246, %s247
      %p259 = scmp.eq.s32.totalorder %s27, 1
      %p260 = por %p258, %p259
      %p262 = scmp.ne.s32.totalorder %s247, %s261
      %p263 = scmp.eq.s32.totalorder %s27, 0
      %p264 = por %p262, %p263
      %s266 = sadd.s32 %s265, 1
      %p269 = scmp.eq.s32.totalorder %s21, 1
      %p270 = scmp.ne.s32.totalorder %s265, %s267
      %p271 = scmp.eq.s32.totalorder %s21, 0
      %p272 = por %p270, %p271
      %p273 = scmp.ne.s32.totalorder %s265, %s267
      %p274 = scmp.eq.s32.totalorder %s26, 1
      %p275 = por %p273, %p274
      %p276 = scmp.ne.s32.totalorder %s267, %s268
      %p277 = scmp.eq.s32.totalorder %s26, 0
      %p278 = por %p276, %p277
      %p279 = scmp.ne.s32.totalorder %s267, %s268
      %p280 = scmp.eq.s32.totalorder %s27, 1
      %p281 = por %p279, %p280
      %p283 = scmp.ne.s32.totalorder %s268, %s282
      %p284 = scmp.eq.s32.totalorder %s27, 0
      %p285 = por %p283, %p284
      %s286 = ssub.s32 %s21, %s28
      %p287 = scmp.eq.s32.totalorder %s286, 0
      %s289 = sadd.s32 %s288, 1
      %s290 = scalar_select %p287, %s288, %s289
      %p293 = pneg %p287
      %p294 = scmp.eq.s32.totalorder %s21, 1
      %p295 = por %p293, %p294
      %p296 = scmp.ne.s32.totalorder %s288, %s291
      %p297 = scmp.eq.s32.totalorder %s21, 0
      %p298 = por %p296, %p297
      %p299 = scmp.ne.s32.totalorder %s288, %s291
      %p300 = scmp.eq.s32.totalorder %s26, 1
      %p301 = por %p299, %p300
      %p302 = scmp.ne.s32.totalorder %s291, %s292
      %p303 = scmp.eq.s32.totalorder %s26, 0
      %p304 = por %p302, %p303
      %p305 = scmp.ne.s32.totalorder %s291, %s292
      %p306 = scmp.eq.s32.totalorder %s27, 1
      %p307 = por %p305, %p306
      %p309 = scmp.ne.s32.totalorder %s292, %s308
      %p310 = scmp.eq.s32.totalorder %s27, 0
      %p311 = por %p309, %p310
      %p312 = scmp.le.s32.totalorder 1, %s21
      %p313 = scmp.lt.s32.totalorder %s21, 3
      %p314 = pnand %p312, %p313
      %p315 = pneg %p314
      // Predicated region
      $region9: #{transformer_forward.1} parent=5 // pred_check
        _
      $region10: #{transformer_forward.1} parent=5 // pred_check_branch
        %317 = sbr.rel (%p314) target = $region12
      $region11: #{transformer_forward.1} parent=5 // pred_region
        %s318 = ssub.s32 %s21, 1
        // Predicated region
        $region13: #{transformer_forward.1} parent=11 // pred_check
          %p319 = pneg %p68
        $region14: #{transformer_forward.1} parent=11 // pred_check_branch
          %321 = sbr.rel (%p319) target = $region16
        $region15: #{transformer_forward.1} parent=11 // pred_region
          _
        $region16: #{transformer_forward.1} parent=11 // pred_fallthru
          _
        // Predicated region
        $region17: #{transformer_forward.1} parent=11 // pred_check
          %p322 = pneg %p89
        $region18: #{transformer_forward.1} parent=11 // pred_check_branch
          %324 = sbr.rel (%p322) target = $region20
        $region19: #{transformer_forward.1} parent=11 // pred_region
          _
        $region20: #{transformer_forward.1} parent=11 // pred_fallthru
          _
        // Predicated region
        $region21: #{transformer_forward.1} parent=11 // pred_check
          %p325 = pneg %p110
        $region22: #{transformer_forward.1} parent=11 // pred_check_branch
          %327 = sbr.rel (%p325) target = $region24
        $region23: #{transformer_forward.1} parent=11 // pred_region
          _
        $region24: #{transformer_forward.1} parent=11 // pred_fallthru
          _
        // Predicated region
        $region25: #{transformer_forward.1} parent=11 // pred_check
          %p328 = pneg %p131
        $region26: #{transformer_forward.1} parent=11 // pred_check_branch
          %330 = sbr.rel (%p328) target = $region28
        $region27: #{transformer_forward.1} parent=11 // pred_region
          _
        $region28: #{transformer_forward.1} parent=11 // pred_fallthru
          _
        // Predicated region
        $region29: #{transformer_forward.1} parent=11 // pred_check
          %p331 = pneg %p152
        $region30: #{transformer_forward.1} parent=11 // pred_check_branch
          %333 = sbr.rel (%p331) target = $region32
        $region31: #{transformer_forward.1} parent=11 // pred_region
          _
        $region32: #{transformer_forward.1} parent=11 // pred_fallthru
          _
        // Predicated region
        $region33: #{transformer_forward.1} parent=11 // pred_check
          %p334 = pneg %p173
        $region34: #{transformer_forward.1} parent=11 // pred_check_branch
          %336 = sbr.rel (%p334) target = $region36
        $region35: #{transformer_forward.1} parent=11 // pred_region
          _
        $region36: #{transformer_forward.1} parent=11 // pred_fallthru
          _
        // Predicated region
        $region37: #{transformer_forward.1} parent=11 // pred_check
          %p337 = pneg %p194
        $region38: #{transformer_forward.1} parent=11 // pred_check_branch
          %339 = sbr.rel (%p337) target = $region40
        $region39: #{transformer_forward.1} parent=11 // pred_region
          _
        $region40: #{transformer_forward.1} parent=11 // pred_fallthru
          _
        // Predicated region
        $region41: #{transformer_forward.1} parent=11 // pred_check
          %p340 = pneg %p215
        $region42: #{transformer_forward.1} parent=11 // pred_check_branch
          %342 = sbr.rel (%p340) target = $region44
        $region43: #{transformer_forward.1} parent=11 // pred_region
          _
        $region44: #{transformer_forward.1} parent=11 // pred_fallthru
          _
        // Predicated region
        $region45: #{transformer_forward.1} parent=11 // pred_check
          %p343 = pneg %p236
        $region46: #{transformer_forward.1} parent=11 // pred_check_branch
          %345 = sbr.rel (%p343) target = $region48
        $region47: #{transformer_forward.1} parent=11 // pred_region
          _
        $region48: #{transformer_forward.1} parent=11 // pred_fallthru
          _
        // Predicated region
        $region49: #{transformer_forward.1} parent=11 // pred_check
          %p346 = pneg %p257
        $region50: #{transformer_forward.1} parent=11 // pred_check_branch
          %348 = sbr.rel (%p346) target = $region52
        $region51: #{transformer_forward.1} parent=11 // pred_region
          _
        $region52: #{transformer_forward.1} parent=11 // pred_fallthru
          _
        // Predicated region
        $region53: #{transformer_forward.1} parent=11 // pred_check
          %p349 = pneg %p278
        $region54: #{transformer_forward.1} parent=11 // pred_check_branch
          %351 = sbr.rel (%p349) target = $region56
        $region55: #{transformer_forward.1} parent=11 // pred_region
          _
        $region56: #{transformer_forward.1} parent=11 // pred_fallthru
          _
      $region12: #{transformer_forward.1} parent=5 // pred_fallthru
        _
      %p352 = scmp.lt.s32.totalorder %s21, 2
      // Predicated region
      $region57: #{transformer_forward.1} parent=5 // pred_check
        %p353 = pneg %p352
      $region58: #{transformer_forward.1} parent=5 // pred_check_branch
        %355 = sbr.rel (%p353) target = $region60
      $region59: #{transformer_forward.1} parent=5 // pred_region
        // Predicated region
        $region61: #{transformer_forward.1} parent=59 // pred_check
          %p356 = pneg %p41
        $region62: #{transformer_forward.1} parent=59 // pred_check_branch
          %358 = sbr.rel (%p356) target = $region64
        $region63: #{transformer_forward.1} parent=59 // pred_region
          %p359 = scmp.lt.s32.totalorder %s21, 1
          %s360 = scalar_select %p359, %s21, 1
          %s361 = smul.addr %s360, 8
          %s362 = scalar_lea.vmem %s0, %s361
        $region64: #{transformer_forward.1} parent=59 // pred_fallthru
          _
      $region60: #{transformer_forward.1} parent=5 // pred_fallthru
        _
      %p363 = scmp.le.s32.totalorder 1, %s21
      %p364 = scmp.lt.s32.totalorder %s21, 3
      %p365 = pnand %p363, %p364
      %p366 = pneg %p365
      // Predicated region
      $region65: #{transformer_forward.1} parent=5 // pred_check
        _
      $region66: #{transformer_forward.1} parent=5 // pred_check_branch
        %368 = sbr.rel (%p365) target = $region68
      $region67: #{transformer_forward.1} parent=5 // pred_region
        %s369 = ssub.s32 %s21, 1
        %p370 = scmp.lt.s32.totalorder %s26, 1
        %s371 = scalar_select %p370, %s26, 1
        %s372 = smul.addr %s371, 8
        %s373 = scalar_lea.vmem %s0, %s372
        %p374 = pneg %p47
        %p375 = pneg %p44
        %p376 = pneg %p68
        %p377 = pneg %p65
        %p378 = pneg %p89
        %p379 = pneg %p86
        %p380 = pneg %p110
        %p381 = pneg %p107
        %p382 = pneg %p131
        %p383 = pneg %p128
        %p384 = pneg %p152
        %p385 = pneg %p149
        %p386 = pneg %p173
        %p387 = pneg %p170
        %p388 = pneg %p194
        %p389 = pneg %p191
        %p390 = pneg %p215
        %p391 = pneg %p212
        %p392 = pneg %p236
        %p393 = pneg %p233
        %p394 = pneg %p257
        %p395 = pneg %p254
        %p396 = pneg %p278
        %p397 = pneg %p275
        %p398 = pneg %p304
        %p399 = pneg %p301
        %s400 = sand.u32 %s291, 1
        %s401 = scalar_lea.sflag [#allocation3], %s400
        %s402 = sand.u32 %s291, 1
        %s403 = smul.addr %s402, 8
        %s404 = scalar_lea.vmem [#allocation2], %s403
        %p405 = scmp.lt.s32.totalorder %s26, 1
        %s406 = scalar_select %p405, %s26, 1
        %s407 = smul.addr %s406, 8
        %s408 = scalar_lea.vmem %s0, %s407
        %v410 = vld [vmem:[%s408] sm:$0xff]
        %v411 = vld [vmem:[%s1] sm:$0xff]
        %v412 = vld [vmem:[%s2] sm:$0xff]
        %v413 = vld [vmem:[%s3] sm:$0xff]
        %v414 = vld [vmem:[%s4] sm:$0x1]
        %v415 = vmul.f32 %v410, %v410
        %vm416 = vcmask 261120
        %v417 = vsel %vm416, %v415, 0.0
        %418 = vadd.xlane.f32.xlu0 %v417
        %v419 = vpop.xlane.xlu0 %418
        %v420 = vrcp.pop 32.0
        %v421 = vmul.f32 %v419, %v420
        %v422 = vadd.f32 %v421, 1.1920929e-07
        %v423 = vrsqrt.pop %v422
        %v424 = vmul.f32 %v410, %v423
        %v426 = vlaneseq
        %v427 = vshrl.u32 %v426, 7
        %v428 = vsub.s32 0, %v427
        %v429 = vrot.slane %v414, %v428
        %v431 = vmul.f32 %v424, %v429
        %v432 = vpack.c.bf16 %v431, %v431
        %v433 = vld [vmem:[%s5] sm:$0xff]
        %v434 = vld [vmem:[%s5 + $0x8] sm:$0xff]
        %v435 = vld [vmem:[%s5 + $0x10] sm:$0xff]
        %v436 = vld [vmem:[%s5 + $0x18] sm:$0xff]
        %v441 = vunpack.c.l.b16 %v433
        %v442 = vunpack.c.h.b16 %v433
        %v443 = vunpack.c.l.b16 %v434
        %v444 = vunpack.c.h.b16 %v434
        %v445 = vunpack.c.l.b16 %v435
        %v446 = vunpack.c.h.b16 %v435
        %v447 = vunpack.c.l.b16 %v436
        %v448 = vunpack.c.h.b16 %v436
        %v449 = vpack.c.b16 %v443, %v441
        %v450 = vpack.c.b16 %v444, %v442
        %v451 = vpack.c.b16 %v447, %v445
        %v452 = vpack.c.b16 %v448, %v446
        %v458 = vsel %vm416, %v432, 0
        %460 = vmatprep.subr.bf16.mxu0 0
        %461 = vmatpush1.bf16.msra.mxu0 0
        %462 = vmatprep.subr.bf16.mxu0 0
        %463 = vmatpush1.bf16.msra.mxu0 0
        %464 = vmatprep.subr.bf16.mxu0 0
        %465 = vmatpush1.bf16.msra.mxu0 0
        %466 = vmatprep.subr.bf16.mxu0 0
        %467 = vmatpush1.bf16.msra.mxu0 0
        %468 = vmatprep.subr.bf16.mxu0 0
        %469 = vmatpush1.bf16.msra.mxu0 0
        %470 = vmatprep.subr.bf16.mxu0 0
        %471 = vmatpush1.bf16.msra.mxu0 0
        %472 = vmatprep.subr.bf16.mxu0 %v452
        %473 = vmatpush1.bf16.msra.mxu0 %v451
        %474 = vmatprep.subr.bf16.mxu0 %v450
        %475 = vmatpush1.bf16.msra.mxu0 %v449
        %476 = vmatprep.subr.bf16.mxu0 0
        %477 = vmatpush2.bf16.msra.mxu0 0
        %478 = vmatprep.subr.bf16.mxu0 0
        %479 = vmatpush2.bf16.msra.mxu0 0
        %480 = vmatprep.subr.bf16.mxu0 0
        %481 = vmatpush2.bf16.msra.mxu0 0
        %482 = vmatprep.subr.bf16.mxu0 0
        %483 = vmatpush2.bf16.msra.mxu0 0
        %484 = vmatprep.subr.bf16.mxu0 0
        %485 = vmatpush2.bf16.msra.mxu0 0
        %486 = vmatprep.subr.bf16.mxu0 0
        %487 = vmatpush2.bf16.msra.mxu0 0
        %488 = vmatprep.subr.bf16.mxu0 0
        %489 = vmatpush2.bf16.msra.mxu0 0
        %490 = vmatprep.subr.bf16.mxu0 0
        %491 = vmatpush2.bf16.msra.mxu0 0
        %492 = vmatprep.mubr.bf16.mxu0 0
        %493 = vmatmul.mubr.bf16.gmra.mxu0 %v458
        %v494 = vpop.f32.mrf.mxu0
        %v495 = vadd.f32 0.0, %v494
        %v496 = vpop.f32.mrf.mxu0
        %v497 = vadd.f32 0.0, %v496
        %v498 = vpop.f32.mrf.mxu0
        %v499 = vpop.f32.mrf.mxu0
        %500 = vdwg.mxu0
        %v501 = vmul.f32 %v495, %v411
        %503 = vrot.lane.b32.xlu0 %v412, 32
        %v504 = vpop.permute.xlu0 %503
        %v506 = vmul.f32 %v495, %v504
        %508 = vrot.lane.b32.xlu0 %v506, 96
        %v509 = vpop.permute.xlu0 %508
        %v511 = vadd.f32 %v501, %v509
        %513 = vrot.lane.b32.xlu0 %v411, 64
        %v514 = vpop.permute.xlu0 %513
        %v516 = vmul.f32 %v495, %v514
        %517 = vrot.lane.b32.xlu0 %v412, 96
        %v518 = vpop.permute.xlu0 %517
        %v520 = vmul.f32 %v495, %v518
        %522 = vrot.lane.b32.xlu0 %v520, 96
        %v523 = vpop.permute.xlu0 %522
        %v525 = vadd.f32 %v516, %v523
        %v526 = vpack.c.bf16 %v511, %v511
        %v527 = vpack.c.bf16 %v525, %v525
        %529 = vrot.lane.b32.xlu0 %v527, 64
        %v530 = vpop.permute.xlu0 %529
        %vm531 = vcmask 130048
        %v533 = vsel %vm531, %v526, 0
        %v536 = vsel %vm531, %v530, 0
        %538 = vmatprep.subr.bf16.mxu0 0
        %539 = vmatpush1.bf16.xpose.msra.mxu0 0
        %540 = vmatprep.subr.bf16.mxu0 0
        %541 = vmatpush1.bf16.xpose.msra.mxu0 0
        %542 = vmatprep.subr.bf16.mxu0 0
        %543 = vmatpush1.bf16.xpose.msra.mxu0 0
        %544 = vmatprep.subr.bf16.mxu0 0
        %545 = vmatpush1.bf16.xpose.msra.mxu0 0
        %546 = vmatprep.subr.bf16.mxu0 0
        %547 = vmatpush1.bf16.xpose.msra.mxu0 0
        %548 = vmatprep.subr.bf16.mxu0 0
        %549 = vmatpush1.bf16.xpose.msra.mxu0 0
        %550 = vmatprep.subr.bf16.mxu0 0
        %551 = vmatpush1.bf16.xpose.msra.mxu0 0
        %552 = vmatprep.subr.bf16.mxu0 0
        %553 = vmatpush1.bf16.xpose.msra.mxu0 %v536
        %554 = vmatprep.subr.bf16.mxu0 0
        %555 = vmatpush2.bf16.xpose.msra.mxu0 0
        %556 = vmatprep.subr.bf16.mxu0 0
        %557 = vmatpush2.bf16.xpose.msra.mxu0 0
        %558 = vmatprep.subr.bf16.mxu0 0
        %559 = vmatpush2.bf16.xpose.msra.mxu0 0
        %560 = vmatprep.subr.bf16.mxu0 0
        %561 = vmatpush2.bf16.xpose.msra.mxu0 0
        %562 = vmatprep.subr.bf16.mxu0 0
        %563 = vmatpush2.bf16.xpose.msra.mxu0 0
        %564 = vmatprep.subr.bf16.mxu0 0
        %565 = vmatpush2.bf16.xpose.msra.mxu0 0
        %566 = vmatprep.subr.bf16.mxu0 0
        %567 = vmatpush2.bf16.xpose.msra.mxu0 0
        %568 = vmatprep.subr.bf16.mxu0 0
        %569 = vmatpush2.bf16.xpose.msra.mxu0 0
        %570 = vmatprep.mubr.bf16.mxu0 0
        %571 = vmatmul.mubr.bf16.gmra.mxu0 %v533
        %v572 = vpop.f32.mrf.mxu0
        %v573 = vadd.f32 %v413, %v572
        %v574 = vpop.f32.mrf.mxu0
        %v575 = vpop.f32.mrf.mxu0
        %v576 = vpop.f32.mrf.mxu0
        %577 = vdwg.mxu0
        %vm578 = vcmask 64512
        %v579 = vsel %vm578, %v573, -inf
        %580 = vmax.xlane.f32.xlu0 %v579
        %v581 = vpop.xlane.xlu0 %580
        %v582 = vsub.f32 %v573, %v581
        %v583 = vmul.f32 %v582, 1.442695
        %v584 = vpow.pop %v583
        %v585 = vsel %vm578, %v584, 0.0
        %586 = vadd.xlane.f32.xlu0 %v585
        %v587 = vpop.xlane.xlu0 %586
        %v588 = vrcp.pop %v587
        %v589 = vmul.f32 %v584, %v588
        %v590 = vpack.c.bf16 %v589, %v589
        %v591 = vpack.c.bf16 %v497, %v497
        %v593 = vsel %vm578, %v590, 0
        %vm595 = vcmask 1043456
        %v597 = vsel %vm595, %v591, 0
        %599 = vmatprep.subr.bf16.mxu0 0
        %600 = vmatpush1.bf16.msra.mxu0 0
        %601 = vmatprep.subr.bf16.mxu0 0
        %602 = vmatpush1.bf16.msra.mxu0 0
        %603 = vmatprep.subr.bf16.mxu0 0
        %604 = vmatpush1.bf16.msra.mxu0 0
        %605 = vmatprep.subr.bf16.mxu0 0
        %606 = vmatpush1.bf16.msra.mxu0 0
        %607 = vmatprep.subr.bf16.mxu0 0
        %608 = vmatpush1.bf16.msra.mxu0 0
        %609 = vmatprep.subr.bf16.mxu0 0
        %610 = vmatpush1.bf16.msra.mxu0 0
        %611 = vmatprep.subr.bf16.mxu0 0
        %612 = vmatpush1.bf16.msra.mxu0 0
        %613 = vmatprep.subr.bf16.mxu0 0
        %614 = vmatpush1.bf16.msra.mxu0 %v597
        %615 = vmatprep.subr.bf16.mxu0 0
        %616 = vmatpush2.bf16.msra.mxu0 0
        %617 = vmatprep.subr.bf16.mxu0 0
        %618 = vmatpush2.bf16.msra.mxu0 0
        %619 = vmatprep.subr.bf16.mxu0 0
        %620 = vmatpush2.bf16.msra.mxu0 0
        %621 = vmatprep.subr.bf16.mxu0 0
        %622 = vmatpush2.bf16.msra.mxu0 0
        %623 = vmatprep.subr.bf16.mxu0 0
        %624 = vmatpush2.bf16.msra.mxu0 0
        %625 = vmatprep.subr.bf16.mxu0 0
        %626 = vmatpush2.bf16.msra.mxu0 0
        %627 = vmatprep.subr.bf16.mxu0 0
        %628 = vmatpush2.bf16.msra.mxu0 0
        %629 = vmatprep.subr.bf16.mxu0 0
        %630 = vmatpush2.bf16.msra.mxu0 0
        %631 = vmatprep.mubr.bf16.mxu0 0
        %632 = vmatmul.mubr.bf16.gmra.mxu0 %v593
        %v633 = vpop.f32.mrf.mxu0
        %v634 = vadd.f32 0.0, %v633
        %v635 = vpop.f32.mrf.mxu0
        %v636 = vpop.f32.mrf.mxu0
        %v637 = vpop.f32.mrf.mxu0
        %638 = vdwg.mxu0
        %v639 = vpack.c.bf16 %v634, %v634
        %v640 = vld [vmem:[%s6] sm:$0xf]
        %v641 = vld [vmem:[%s6 + $0x4] sm:$0xf]
        %v644 = vunpack.c.l.b16 %v640
        %v645 = vunpack.c.l.b16 %v641
        %v646 = vpack.c.b16 %v645, %v644
        %v649 = vsel %vm531, %v639, 0
        %651 = vmatprep.subr.bf16.mxu0 0
        %652 = vmatpush1.bf16.msra.mxu0 0
        %653 = vmatprep.subr.bf16.mxu0 0
        %654 = vmatpush1.bf16.msra.mxu0 0
        %655 = vmatprep.subr.bf16.mxu0 0
        %656 = vmatpush1.bf16.msra.mxu0 0
        %657 = vmatprep.subr.bf16.mxu0 0
        %658 = vmatpush1.bf16.msra.mxu0 0
        %659 = vmatprep.subr.bf16.mxu0 0
        %660 = vmatpush1.bf16.msra.mxu0 0
        %661 = vmatprep.subr.bf16.mxu0 0
        %662 = vmatpush1.bf16.msra.mxu0 0
        %663 = vmatprep.subr.bf16.mxu0 0
        %664 = vmatpush1.bf16.msra.mxu0 0
        %665 = vmatprep.subr.bf16.mxu0 0
        %666 = vmatpush1.bf16.msra.mxu0 %v646
        %667 = vmatprep.subr.bf16.mxu0 0
        %668 = vmatpush2.bf16.msra.mxu0 0
        %669 = vmatprep.subr.bf16.mxu0 0
        %670 = vmatpush2.bf16.msra.mxu0 0
        %671 = vmatprep.subr.bf16.mxu0 0
        %672 = vmatpush2.bf16.msra.mxu0 0
        %673 = vmatprep.subr.bf16.mxu0 0
        %674 = vmatpush2.bf16.msra.mxu0 0
        %675 = vmatprep.subr.bf16.mxu0 0
        %676 = vmatpush2.bf16.msra.mxu0 0
        %677 = vmatprep.subr.bf16.mxu0 0
        %678 = vmatpush2.bf16.msra.mxu0 0
        %679 = vmatprep.subr.bf16.mxu0 0
        %680 = vmatpush2.bf16.msra.mxu0 0
        %681 = vmatprep.subr.bf16.mxu0 0
        %682 = vmatpush2.bf16.msra.mxu0 0
        %683 = vmatprep.mubr.bf16.mxu0 0
        %684 = vmatmul.mubr.bf16.gmra.mxu0 %v649
        %v685 = vpop.f32.mrf.mxu0
        %v686 = vadd.f32 0.0, %v685
        %v687 = vpop.f32.mrf.mxu0
        %v688 = vpop.f32.mrf.mxu0
        %v689 = vpop.f32.mrf.mxu0
        %690 = vdwg.mxu0
        %v691 = vadd.f32 %v410, %v686
        %693 = vrot.lane.b32.xlu0 %v526, 112
        %v694 = vpop.permute.xlu0 %693
        %695 = vrot.lane.b32.xlu0 %v527, 48
        %v696 = vpop.permute.xlu0 %695
        %v698 = vsel %vm531, %v694, 0
        %v701 = vsel %vm531, %v696, 0
        %703 = vmatprep.subr.bf16.mxu0 0
        %704 = vmatpush1.bf16.xpose.msra.mxu0 0
        %705 = vmatprep.subr.bf16.mxu0 0
        %706 = vmatpush1.bf16.xpose.msra.mxu0 0
        %707 = vmatprep.subr.bf16.mxu0 0
        %708 = vmatpush1.bf16.xpose.msra.mxu0 0
        %709 = vmatprep.subr.bf16.mxu0 0
        %710 = vmatpush1.bf16.xpose.msra.mxu0 0
        %711 = vmatprep.subr.bf16.mxu0 0
        %712 = vmatpush1.bf16.xpose.msra.mxu0 0
        %713 = vmatprep.subr.bf16.mxu0 0
        %714 = vmatpush1.bf16.xpose.msra.mxu0 0
        %715 = vmatprep.subr.bf16.mxu0 0
        %716 = vmatpush1.bf16.xpose.msra.mxu0 0
        %717 = vmatprep.subr.bf16.mxu0 0
        %718 = vmatpush1.bf16.xpose.msra.mxu0 %v701
        %719 = vmatprep.subr.bf16.mxu0 0
        %720 = vmatpush2.bf16.xpose.msra.mxu0 0
        %721 = vmatprep.subr.bf16.mxu0 0
        %722 = vmatpush2.bf16.xpose.msra.mxu0 0
        %723 = vmatprep.subr.bf16.mxu0 0
        %724 = vmatpush2.bf16.xpose.msra.mxu0 0
        %725 = vmatprep.subr.bf16.mxu0 0
        %726 = vmatpush2.bf16.xpose.msra.mxu0 0
        %727 = vmatprep.subr.bf16.mxu0 0
        %728 = vmatpush2.bf16.xpose.msra.mxu0 0
        %729 = vmatprep.subr.bf16.mxu0 0
        %730 = vmatpush2.bf16.xpose.msra.mxu0 0
        %731 = vmatprep.subr.bf16.mxu0 0
        %732 = vmatpush2.bf16.xpose.msra.mxu0 0
        %733 = vmatprep.subr.bf16.mxu0 0
        %734 = vmatpush2.bf16.xpose.msra.mxu0 0
        %735 = vmatprep.mubr.bf16.mxu0 0
        %736 = vmatmul.mubr.bf16.gmra.mxu0 %v698
        %v737 = vpop.f32.mrf.mxu0
        %v738 = vadd.f32 %v413, %v737
        %v739 = vpop.f32.mrf.mxu0
        %v740 = vpop.f32.mrf.mxu0
        %v741 = vpop.f32.mrf.mxu0
        %742 = vdwg.mxu0
        %v743 = vsel %vm578, %v738, -inf
        %744 = vmax.xlane.f32.xlu0 %v743
        %v745 = vpop.xlane.xlu0 %744
        %v746 = vsub.f32 %v738, %v745
        %v747 = vmul.f32 %v746, 1.442695
        %v748 = vpow.pop %v747
        %v749 = vsel %vm578, %v748, 0.0
        %750 = vadd.xlane.f32.xlu0 %v749
        %v751 = vpop.xlane.xlu0 %750
        %v752 = vrcp.pop %v751
        %v753 = vmul.f32 %v748, %v752
        %v754 = vpack.c.bf16 %v753, %v753
        %756 = vrot.lane.b32.xlu0 %v591, 112
        %v757 = vpop.permute.xlu0 %756
        %v759 = vsel %vm578, %v754, 0
        %v762 = vsel %vm595, %v757, 0
        %764 = vmatprep.subr.bf16.mxu0 0
        %765 = vmatpush1.bf16.msra.mxu0 0
        %766 = vmatprep.subr.bf16.mxu0 0
        %767 = vmatpush1.bf16.msra.mxu0 0
        %768 = vmatprep.subr.bf16.mxu0 0
        %769 = vmatpush1.bf16.msra.mxu0 0
        %770 = vmatprep.subr.bf16.mxu0 0
        %771 = vmatpush1.bf16.msra.mxu0 0
        %772 = vmatprep.subr.bf16.mxu0 0
        %773 = vmatpush1.bf16.msra.mxu0 0
        %774 = vmatprep.subr.bf16.mxu0 0
        %775 = vmatpush1.bf16.msra.mxu0 0
        %776 = vmatprep.subr.bf16.mxu0 0
        %777 = vmatpush1.bf16.msra.mxu0 0
        %778 = vmatprep.subr.bf16.mxu0 0
        %779 = vmatpush1.bf16.msra.mxu0 %v762
        %780 = vmatprep.subr.bf16.mxu0 0
        %781 = vmatpush2.bf16.msra.mxu0 0
        %782 = vmatprep.subr.bf16.mxu0 0
        %783 = vmatpush2.bf16.msra.mxu0 0
        %784 = vmatprep.subr.bf16.mxu0 0
        %785 = vmatpush2.bf16.msra.mxu0 0
        %786 = vmatprep.subr.bf16.mxu0 0
        %787 = vmatpush2.bf16.msra.mxu0 0
        %788 = vmatprep.subr.bf16.mxu0 0
        %789 = vmatpush2.bf16.msra.mxu0 0
        %790 = vmatprep.subr.bf16.mxu0 0
        %791 = vmatpush2.bf16.msra.mxu0 0
        %792 = vmatprep.subr.bf16.mxu0 0
        %793 = vmatpush2.bf16.msra.mxu0 0
        %794 = vmatprep.subr.bf16.mxu0 0
        %795 = vmatpush2.bf16.msra.mxu0 0
        %796 = vmatprep.mubr.bf16.mxu0 0
        %797 = vmatmul.mubr.bf16.gmra.mxu0 %v759
        %v798 = vpop.f32.mrf.mxu0
        %v799 = vadd.f32 0.0, %v798
        %v800 = vpop.f32.mrf.mxu0
        %v801 = vpop.f32.mrf.mxu0
        %v802 = vpop.f32.mrf.mxu0
        %803 = vdwg.mxu0
        %v804 = vpack.c.bf16 %v799, %v799
        %s805 = scalar_lea.vmem %s6, 8
        %v806 = vld [vmem:[%s805] sm:$0xf]
        %v807 = vld [vmem:[%s805 + $0x4] sm:$0xf]
        %v810 = vunpack.c.l.b16 %v806
        %v811 = vunpack.c.l.b16 %v807
        %v812 = vpack.c.b16 %v811, %v810
        %v815 = vsel %vm531, %v804, 0
        %817 = vmatprep.subr.bf16.mxu0 0
        %818 = vmatpush1.bf16.msra.mxu0 0
        %819 = vmatprep.subr.bf16.mxu0 0
        %820 = vmatpush1.bf16.msra.mxu0 0
        %821 = vmatprep.subr.bf16.mxu0 0
        %822 = vmatpush1.bf16.msra.mxu0 0
        %823 = vmatprep.subr.bf16.mxu0 0
        %824 = vmatpush1.bf16.msra.mxu0 0
        %825 = vmatprep.subr.bf16.mxu0 0
        %826 = vmatpush1.bf16.msra.mxu0 0
        %827 = vmatprep.subr.bf16.mxu0 0
        %828 = vmatpush1.bf16.msra.mxu0 0
        %829 = vmatprep.subr.bf16.mxu0 0
        %830 = vmatpush1.bf16.msra.mxu0 0
        %831 = vmatprep.subr.bf16.mxu0 0
        %832 = vmatpush1.bf16.msra.mxu0 %v812
        %833 = vmatprep.subr.bf16.mxu0 0
        %834 = vmatpush2.bf16.msra.mxu0 0
        %835 = vmatprep.subr.bf16.mxu0 0
        %836 = vmatpush2.bf16.msra.mxu0 0
        %837 = vmatprep.subr.bf16.mxu0 0
        %838 = vmatpush2.bf16.msra.mxu0 0
        %839 = vmatprep.subr.bf16.mxu0 0
        %840 = vmatpush2.bf16.msra.mxu0 0
        %841 = vmatprep.subr.bf16.mxu0 0
        %842 = vmatpush2.bf16.msra.mxu0 0
        %843 = vmatprep.subr.bf16.mxu0 0
        %844 = vmatpush2.bf16.msra.mxu0 0
        %845 = vmatprep.subr.bf16.mxu0 0
        %846 = vmatpush2.bf16.msra.mxu0 0
        %847 = vmatprep.subr.bf16.mxu0 0
        %848 = vmatpush2.bf16.msra.mxu0 0
        %849 = vmatprep.mubr.bf16.mxu0 0
        %850 = vmatmul.mubr.bf16.gmra.mxu0 %v815
        %v851 = vpop.f32.mrf.mxu0
        %v852 = vadd.f32 0.0, %v851
        %v853 = vpop.f32.mrf.mxu0
        %v854 = vpop.f32.mrf.mxu0
        %v855 = vpop.f32.mrf.mxu0
        %856 = vdwg.mxu0
        %v857 = vadd.f32 %v691, %v852
        %v858 = vld [vmem:[%s7] sm:$0x1]
        %v859 = vmul.f32 %v857, %v857
        %v860 = vsel %vm416, %v859, 0.0
        %861 = vadd.xlane.f32.xlu0 %v860
        %v862 = vpop.xlane.xlu0 %861
        %v863 = vmul.f32 %v862, %v420
        %v864 = vadd.f32 %v863, 1.1920929e-07
        %v865 = vrsqrt.pop %v864
        %v866 = vmul.f32 %v857, %v865
        %v868 = vlaneseq
        %v869 = vshrl.u32 %v868, 7
        %v870 = vsub.s32 0, %v869
        %v871 = vrot.slane %v858, %v870
        %v873 = vmul.f32 %v866, %v871
        %v874 = vpack.c.bf16 %v873, %v873
        %v875 = vld [vmem:[%s8] sm:$0xff]
        %v876 = vld [vmem:[%s8 + $0x8] sm:$0xff]
        %v877 = vld [vmem:[%s8 + $0x10] sm:$0xff]
        %v878 = vld [vmem:[%s8 + $0x18] sm:$0xff]
        %v883 = vunpack.c.l.b16 %v875
        %v884 = vunpack.c.h.b16 %v875
        %v885 = vunpack.c.l.b16 %v876
        %v886 = vunpack.c.h.b16 %v876
        %v887 = vunpack.c.l.b16 %v877
        %v888 = vunpack.c.h.b16 %v877
        %v889 = vunpack.c.l.b16 %v878
        %v890 = vunpack.c.h.b16 %v878
        %v891 = vpack.c.b16 %v885, %v883
        %v892 = vpack.c.b16 %v886, %v884
        %v893 = vpack.c.b16 %v889, %v887
        %v894 = vpack.c.b16 %v890, %v888
        %v900 = vsel %vm416, %v874, 0
        %902 = vmatprep.subr.bf16.mxu0 0
        %903 = vmatpush1.bf16.msra.mxu0 0
        %904 = vmatprep.subr.bf16.mxu0 0
        %905 = vmatpush1.bf16.msra.mxu0 0
        %906 = vmatprep.subr.bf16.mxu0 0
        %907 = vmatpush1.bf16.msra.mxu0 0
        %908 = vmatprep.subr.bf16.mxu0 0
        %909 = vmatpush1.bf16.msra.mxu0 0
        %910 = vmatprep.subr.bf16.mxu0 0
        %911 = vmatpush1.bf16.msra.mxu0 0
        %912 = vmatprep.subr.bf16.mxu0 0
        %913 = vmatpush1.bf16.msra.mxu0 0
        %914 = vmatprep.subr.bf16.mxu0 %v894
        %915 = vmatpush1.bf16.msra.mxu0 %v893
        %916 = vmatprep.subr.bf16.mxu0 %v892
        %917 = vmatpush1.bf16.msra.mxu0 %v891
        %918 = vmatprep.subr.bf16.mxu0 0
        %919 = vmatpush2.bf16.msra.mxu0 0
        %920 = vmatprep.subr.bf16.mxu0 0
        %921 = vmatpush2.bf16.msra.mxu0 0
        %922 = vmatprep.subr.bf16.mxu0 0
        %923 = vmatpush2.bf16.msra.mxu0 0
        %924 = vmatprep.subr.bf16.mxu0 0
        %925 = vmatpush2.bf16.msra.mxu0 0
        %926 = vmatprep.subr.bf16.mxu0 0
        %927 = vmatpush2.bf16.msra.mxu0 0
        %928 = vmatprep.subr.bf16.mxu0 0
        %929 = vmatpush2.bf16.msra.mxu0 0
        %930 = vmatprep.subr.bf16.mxu0 0
        %931 = vmatpush2.bf16.msra.mxu0 0
        %932 = vmatprep.subr.bf16.mxu0 0
        %933 = vmatpush2.bf16.msra.mxu0 0
        %934 = vmatprep.mubr.bf16.mxu0 0
        %935 = vmatmul.mubr.bf16.gmra.mxu0 %v900
        %v936 = vpop.f32.mrf.mxu0
        %v937 = vadd.f32 0.0, %v936
        %v938 = vpop.f32.mrf.mxu0
        %v939 = vadd.f32 0.0, %v938
        %v940 = vpop.f32.mrf.mxu0
        %v941 = vpop.f32.mrf.mxu0
        %942 = vdwg.mxu0
        %v943 = vmul.f32 %v939, 0.5
        %v944 = vmul.f32 %v939, 0.044715
        %v945 = vmul.f32 %v944, %v939
        %v946 = vmul.f32 %v945, %v939
        %v947 = vadd.f32 %v939, %v946
        %v948 = vmul.f32 %v947, 0.7978846
        %v949 = vtanh.pop %v948
        %v950 = vadd.f32 %v949, 1.0
        %v951 = vmul.f32 %v943, %v950
        %v952 = vmul.f32 %v937, %v951
        %v953 = vpack.c.bf16 %v952, %v952
        %v954 = vld [vmem:[%s9] sm:$0xf]
        %v955 = vld [vmem:[%s9 + $0x4] sm:$0xf]
        %v956 = vld [vmem:[%s9 + $0x8] sm:$0xf]
        %v957 = vld [vmem:[%s9 + $0xc] sm:$0xf]
        %v958 = vld [vmem:[%s9 + $0x10] sm:$0xf]
        %v959 = vld [vmem:[%s9 + $0x14] sm:$0xf]
        %v960 = vld [vmem:[%s9 + $0x18] sm:$0xf]
        %v961 = vld [vmem:[%s9 + $0x1c] sm:$0xf]
        %v962 = vld [vmem:[%s9 + $0x20] sm:$0xf]
        %v963 = vld [vmem:[%s9 + $0x24] sm:$0xf]
        %v964 = vld [vmem:[%s9 + $0x28] sm:$0xf]
        %v965 = vld [vmem:[%s9 + $0x2c] sm:$0xf]
        %v966 = vld [vmem:[%s9 + $0x30] sm:$0xf]
        %v967 = vld [vmem:[%s9 + $0x34] sm:$0xf]
        %v968 = vld [vmem:[%s9 + $0x38] sm:$0xf]
        %v969 = vld [vmem:[%s9 + $0x3c] sm:$0xf]
        %v986 = vunpack.c.l.b16 %v954
        %v987 = vunpack.c.l.b16 %v955
        %v988 = vunpack.c.l.b16 %v956
        %v989 = vunpack.c.l.b16 %v957
        %v990 = vunpack.c.l.b16 %v958
        %v991 = vunpack.c.l.b16 %v959
        %v992 = vunpack.c.l.b16 %v960
        %v993 = vunpack.c.l.b16 %v961
        %v994 = vunpack.c.l.b16 %v962
        %v995 = vunpack.c.l.b16 %v963
        %v996 = vunpack.c.l.b16 %v964
        %v997 = vunpack.c.l.b16 %v965
        %v998 = vunpack.c.l.b16 %v966
        %v999 = vunpack.c.l.b16 %v967
        %v1000 = vunpack.c.l.b16 %v968
        %v1001 = vunpack.c.l.b16 %v969
        %v1002 = vpack.c.b16 %v987, %v986
        %v1003 = vpack.c.b16 %v989, %v988
        %v1004 = vpack.c.b16 %v991, %v990
        %v1005 = vpack.c.b16 %v993, %v992
        %v1006 = vpack.c.b16 %v995, %v994
        %v1007 = vpack.c.b16 %v997, %v996
        %v1008 = vpack.c.b16 %v999, %v998
        %v1009 = vpack.c.b16 %v1001, %v1000
        %1018 = vmatprep.subr.bf16.mxu0 0
        %1019 = vmatpush1.bf16.msra.mxu0 %v1009
        %1020 = vmatprep.subr.bf16.mxu0 0
        %1021 = vmatpush1.bf16.msra.mxu0 %v1008
        %1022 = vmatprep.subr.bf16.mxu0 0
        %1023 = vmatpush1.bf16.msra.mxu0 %v1007
        %1024 = vmatprep.subr.bf16.mxu0 0
        %1025 = vmatpush1.bf16.msra.mxu0 %v1006
        %1026 = vmatprep.subr.bf16.mxu0 0
        %1027 = vmatpush1.bf16.msra.mxu0 %v1005
        %1028 = vmatprep.subr.bf16.mxu0 0
        %1029 = vmatpush1.bf16.msra.mxu0 %v1004
        %1030 = vmatprep.subr.bf16.mxu0 0
        %1031 = vmatpush1.bf16.msra.mxu0 %v1003
        %1032 = vmatprep.subr.bf16.mxu0 0
        %1033 = vmatpush1.bf16.msra.mxu0 %v1002
        %1034 = vmatprep.subr.bf16.mxu0 0
        %1035 = vmatpush2.bf16.msra.mxu0 0
        %1036 = vmatprep.subr.bf16.mxu0 0
        %1037 = vmatpush2.bf16.msra.mxu0 0
        %1038 = vmatprep.subr.bf16.mxu0 0
        %1039 = vmatpush2.bf16.msra.mxu0 0
        %1040 = vmatprep.subr.bf16.mxu0 0
        %1041 = vmatpush2.bf16.msra.mxu0 0
        %1042 = vmatprep.subr.bf16.mxu0 0
        %1043 = vmatpush2.bf16.msra.mxu0 0
        %1044 = vmatprep.subr.bf16.mxu0 0
        %1045 = vmatpush2.bf16.msra.mxu0 0
        %1046 = vmatprep.subr.bf16.mxu0 0
        %1047 = vmatpush2.bf16.msra.mxu0 0
        %1048 = vmatprep.subr.bf16.mxu0 0
        %1049 = vmatpush2.bf16.msra.mxu0 0
        %1050 = vmatprep.mubr.bf16.mxu0 0
        %1051 = vmatmul.mubr.bf16.gmra.mxu0 %v953
        %v1052 = vpop.f32.mrf.mxu0
        %v1053 = vadd.f32 0.0, %v1052
        %v1054 = vpop.f32.mrf.mxu0
        %v1055 = vpop.f32.mrf.mxu0
        %v1056 = vpop.f32.mrf.mxu0
        %1057 = vdwg.mxu0
        %v1058 = vadd.f32 %v857, %v1053
        %s1059 = scalar_lea.vmem %s4, 1
        %v1060 = vld [vmem:[%s1059] sm:$0x1]
        %v1061 = vmul.f32 %v1058, %v1058
        %v1062 = vsel %vm416, %v1061, 0.0
        %1063 = vadd.xlane.f32.xlu0 %v1062
        %v1064 = vpop.xlane.xlu0 %1063
        %v1065 = vmul.f32 %v1064, %v420
        %v1066 = vadd.f32 %v1065, 1.1920929e-07
        %v1067 = vrsqrt.pop %v1066
        %v1068 = vmul.f32 %v1058, %v1067
        %v1070 = vlaneseq
        %v1071 = vshrl.u32 %v1070, 7
        %v1072 = vsub.s32 0, %v1071
        %v1073 = vrot.slane %v1060, %v1072
        %v1075 = vmul.f32 %v1068, %v1073
        %v1076 = vpack.c.bf16 %v1075, %v1075
        %s1077 = scalar_lea.vmem %s5, 32
        %v1078 = vld [vmem:[%s1077] sm:$0xff]
        %v1079 = vld [vmem:[%s1077 + $0x8] sm:$0xff]
        %v1080 = vld [vmem:[%s1077 + $0x10] sm:$0xff]
        %v1081 = vld [vmem:[%s1077 + $0x18] sm:$0xff]
        %v1086 = vunpack.c.l.b16 %v1078
        %v1087 = vunpack.c.h.b16 %v1078
        %v1088 = vunpack.c.l.b16 %v1079
        %v1089 = vunpack.c.h.b16 %v1079
        %v1090 = vunpack.c.l.b16 %v1080
        %v1091 = vunpack.c.h.b16 %v1080
        %v1092 = vunpack.c.l.b16 %v1081
        %v1093 = vunpack.c.h.b16 %v1081
        %v1094 = vpack.c.b16 %v1088, %v1086
        %v1095 = vpack.c.b16 %v1089, %v1087
        %v1096 = vpack.c.b16 %v1092, %v1090
        %v1097 = vpack.c.b16 %v1093, %v1091
        %v1103 = vsel %vm416, %v1076, 0
        %1105 = vmatprep.subr.bf16.mxu0 0
        %1106 = vmatpush1.bf16.msra.mxu0 0
        %1107 = vmatprep.subr.bf16.mxu0 0
        %1108 = vmatpush1.bf16.msra.mxu0 0
        %1109 = vmatprep.subr.bf16.mxu0 0
        %1110 = vmatpush1.bf16.msra.mxu0 0
        %1111 = vmatprep.subr.bf16.mxu0 0
        %1112 = vmatpush1.bf16.msra.mxu0 0
        %1113 = vmatprep.subr.bf16.mxu0 0
        %1114 = vmatpush1.bf16.msra.mxu0 0
        %1115 = vmatprep.subr.bf16.mxu0 0
        %1116 = vmatpush1.bf16.msra.mxu0 0
        %1117 = vmatprep.subr.bf16.mxu0 %v1097
        %1118 = vmatpush1.bf16.msra.mxu0 %v1096
        %1119 = vmatprep.subr.bf16.mxu0 %v1095
        %1120 = vmatpush1.bf16.msra.mxu0 %v1094
        %1121 = vmatprep.subr.bf16.mxu0 0
        %1122 = vmatpush2.bf16.msra.mxu0 0
        %1123 = vmatprep.subr.bf16.mxu0 0
        %1124 = vmatpush2.bf16.msra.mxu0 0
        %1125 = vmatprep.subr.bf16.mxu0 0
        %1126 = vmatpush2.bf16.msra.mxu0 0
        %1127 = vmatprep.subr.bf16.mxu0 0
        %1128 = vmatpush2.bf16.msra.mxu0 0
        %1129 = vmatprep.subr.bf16.mxu0 0
        %1130 = vmatpush2.bf16.msra.mxu0 0
        %1131 = vmatprep.subr.bf16.mxu0 0
        %1132 = vmatpush2.bf16.msra.mxu0 0
        %1133 = vmatprep.subr.bf16.mxu0 0
        %1134 = vmatpush2.bf16.msra.mxu0 0
        %1135 = vmatprep.subr.bf16.mxu0 0
        %1136 = vmatpush2.bf16.msra.mxu0 0
        %1137 = vmatprep.mubr.bf16.mxu0 0
        %1138 = vmatmul.mubr.bf16.gmra.mxu0 %v1103
        %v1139 = vpop.f32.mrf.mxu0
        %v1140 = vadd.f32 0.0, %v1139
        %v1141 = vpop.f32.mrf.mxu0
        %v1142 = vadd.f32 0.0, %v1141
        %v1143 = vpop.f32.mrf.mxu0
        %v1144 = vpop.f32.mrf.mxu0
        %1145 = vdwg.mxu0
        %v1146 = vmul.f32 %v1140, %v411
        %v1147 = vmul.f32 %v1140, %v504
        %1149 = vrot.lane.b32.xlu0 %v1147, 96
        %v1150 = vpop.permute.xlu0 %1149
        %v1152 = vadd.f32 %v1146, %v1150
        %v1153 = vmul.f32 %v1140, %v514
        %v1154 = vmul.f32 %v1140, %v518
        %1156 = vrot.lane.b32.xlu0 %v1154, 96
        %v1157 = vpop.permute.xlu0 %1156
        %v1159 = vadd.f32 %v1153, %v1157
        %v1160 = vpack.c.bf16 %v1152, %v1152
        %v1161 = vpack.c.bf16 %v1159, %v1159
        %1163 = vrot.lane.b32.xlu0 %v1161, 64
        %v1164 = vpop.permute.xlu0 %1163
        %v1166 = vsel %vm531, %v1160, 0
        %v1169 = vsel %vm531, %v1164, 0
        %1171 = vmatprep.subr.bf16.mxu0 0
        %1172 = vmatpush1.bf16.xpose.msra.mxu0 0
        %1173 = vmatprep.subr.bf16.mxu0 0
        %1174 = vmatpush1.bf16.xpose.msra.mxu0 0
        %1175 = vmatprep.subr.bf16.mxu0 0
        %1176 = vmatpush1.bf16.xpose.msra.mxu0 0
        %1177 = vmatprep.subr.bf16.mxu0 0
        %1178 = vmatpush1.bf16.xpose.msra.mxu0 0
        %1179 = vmatprep.subr.bf16.mxu0 0
        %1180 = vmatpush1.bf16.xpose.msra.mxu0 0
        %1181 = vmatprep.subr.bf16.mxu0 0
        %1182 = vmatpush1.bf16.xpose.msra.mxu0 0
        %1183 = vmatprep.subr.bf16.mxu0 0
        %1184 = vmatpush1.bf16.xpose.msra.mxu0 0
        %1185 = vmatprep.subr.bf16.mxu0 0
        %1186 = vmatpush1.bf16.xpose.msra.mxu0 %v1169
        %1187 = vmatprep.subr.bf16.mxu0 0
        %1188 = vmatpush2.bf16.xpose.msra.mxu0 0
        %1189 = vmatprep.subr.bf16.mxu0 0
        %1190 = vmatpush2.bf16.xpose.msra.mxu0 0
        %1191 = vmatprep.subr.bf16.mxu0 0
        %1192 = vmatpush2.bf16.xpose.msra.mxu0 0
        %1193 = vmatprep.subr.bf16.mxu0 0
        %1194 = vmatpush2.bf16.xpose.msra.mxu0 0
        %1195 = vmatprep.subr.bf16.mxu0 0
        %1196 = vmatpush2.bf16.xpose.msra.mxu0 0
        %1197 = vmatprep.subr.bf16.mxu0 0
        %1198 = vmatpush2.bf16.xpose.msra.mxu0 0
        %1199 = vmatprep.subr.bf16.mxu0 0
        %1200 = vmatpush2.bf16.xpose.msra.mxu0 0
        %1201 = vmatprep.subr.bf16.mxu0 0
        %1202 = vmatpush2.bf16.xpose.msra.mxu0 0
        %1203 = vmatprep.mubr.bf16.mxu0 0
        %1204 = vmatmul.mubr.bf16.gmra.mxu0 %v1166
        %v1205 = vpop.f32.mrf.mxu0
        %v1206 = vadd.f32 %v413, %v1205
        %v1207 = vpop.f32.mrf.mxu0
        %v1208 = vpop.f32.mrf.mxu0
        %v1209 = vpop.f32.mrf.mxu0
        %1210 = vdwg.mxu0
        %v1211 = vsel %vm578, %v1206, -inf
        %1212 = vmax.xlane.f32.xlu0 %v1211
        %v1213 = vpop.xlane.xlu0 %1212
        %v1214 = vsub.f32 %v1206, %v1213
        %v1215 = vmul.f32 %v1214, 1.442695
        %v1216 = vpow.pop %v1215
        %v1217 = vsel %vm578, %v1216, 0.0
        %1218 = vadd.xlane.f32.xlu0 %v1217
        %v1219 = vpop.xlane.xlu0 %1218
        %v1220 = vrcp.pop %v1219
        %v1221 = vmul.f32 %v1216, %v1220
        %v1222 = vpack.c.bf16 %v1221, %v1221
        %v1223 = vpack.c.bf16 %v1142, %v1142
        %v1225 = vsel %vm578, %v1222, 0
        %v1228 = vsel %vm595, %v1223, 0
        %1230 = vmatprep.subr.bf16.mxu0 0
        %1231 = vmatpush1.bf16.msra.mxu0 0
        %1232 = vmatprep.subr.bf16.mxu0 0
        %1233 = vmatpush1.bf16.msra.mxu0 0
        %1234 = vmatprep.subr.bf16.mxu0 0
        %1235 = vmatpush1.bf16.msra.mxu0 0
        %1236 = vmatprep.subr.bf16.mxu0 0
        %1237 = vmatpush1.bf16.msra.mxu0 0
        %1238 = vmatprep.subr.bf16.mxu0 0
        %1239 = vmatpush1.bf16.msra.mxu0 0
        %1240 = vmatprep.subr.bf16.mxu0 0
        %1241 = vmatpush1.bf16.msra.mxu0 0
        %1242 = vmatprep.subr.bf16.mxu0 0
        %1243 = vmatpush1.bf16.msra.mxu0 0
        %1244 = vmatprep.subr.bf16.mxu0 0
        %1245 = vmatpush1.bf16.msra.mxu0 %v1228
        %1246 = vmatprep.subr.bf16.mxu0 0
        %1247 = vmatpush2.bf16.msra.mxu0 0
        %1248 = vmatprep.subr.bf16.mxu0 0
        %1249 = vmatpush2.bf16.msra.mxu0 0
        %1250 = vmatprep.subr.bf16.mxu0 0
        %1251 = vmatpush2.bf16.msra.mxu0 0
        %1252 = vmatprep.subr.bf16.mxu0 0
        %1253 = vmatpush2.bf16.msra.mxu0 0
        %1254 = vmatprep.subr.bf16.mxu0 0
        %1255 = vmatpush2.bf16.msra.mxu0 0
        %1256 = vmatprep.subr.bf16.mxu0 0
        %1257 = vmatpush2.bf16.msra.mxu0 0
        %1258 = vmatprep.subr.bf16.mxu0 0
        %1259 = vmatpush2.bf16.msra.mxu0 0
        %1260 = vmatprep.subr.bf16.mxu0 0
        %1261 = vmatpush2.bf16.msra.mxu0 0
        %1262 = vmatprep.mubr.bf16.mxu0 0
        %1263 = vmatmul.mubr.bf16.gmra.mxu0 %v1225
        %v1264 = vpop.f32.mrf.mxu0
        %v1265 = vadd.f32 0.0, %v1264
        %v1266 = vpop.f32.mrf.mxu0
        %v1267 = vpop.f32.mrf.mxu0
        %v1268 = vpop.f32.mrf.mxu0
        %1269 = vdwg.mxu0
        %v1270 = vpack.c.bf16 %v1265, %v1265
        %s1271 = scalar_lea.vmem %s6, 16
        %v1272 = vld [vmem:[%s1271] sm:$0xf]
        %v1273 = vld [vmem:[%s1271 + $0x4] sm:$0xf]
        %v1276 = vunpack.c.l.b16 %v1272
        %v1277 = vunpack.c.l.b16 %v1273
        %v1278 = vpack.c.b16 %v1277, %v1276
        %v1281 = vsel %vm531, %v1270, 0
        %1283 = vmatprep.subr.bf16.mxu0 0
        %1284 = vmatpush1.bf16.msra.mxu0 0
        %1285 = vmatprep.subr.bf16.mxu0 0
        %1286 = vmatpush1.bf16.msra.mxu0 0
        %1287 = vmatprep.subr.bf16.mxu0 0
        %1288 = vmatpush1.bf16.msra.mxu0 0
        %1289 = vmatprep.subr.bf16.mxu0 0
        %1290 = vmatpush1.bf16.msra.mxu0 0
        %1291 = vmatprep.subr.bf16.mxu0 0
        %1292 = vmatpush1.bf16.msra.mxu0 0
        %1293 = vmatprep.subr.bf16.mxu0 0
        %1294 = vmatpush1.bf16.msra.mxu0 0
        %1295 = vmatprep.subr.bf16.mxu0 0
        %1296 = vmatpush1.bf16.msra.mxu0 0
        %1297 = vmatprep.subr.bf16.mxu0 0
        %1298 = vmatpush1.bf16.msra.mxu0 %v1278
        %1299 = vmatprep.subr.bf16.mxu0 0
        %1300 = vmatpush2.bf16.msra.mxu0 0
        %1301 = vmatprep.subr.bf16.mxu0 0
        %1302 = vmatpush2.bf16.msra.mxu0 0
        %1303 = vmatprep.subr.bf16.mxu0 0
        %1304 = vmatpush2.bf16.msra.mxu0 0
        %1305 = vmatprep.subr.bf16.mxu0 0
        %1306 = vmatpush2.bf16.msra.mxu0 0
        %1307 = vmatprep.subr.bf16.mxu0 0
        %1308 = vmatpush2.bf16.msra.mxu0 0
        %1309 = vmatprep.subr.bf16.mxu0 0
        %1310 = vmatpush2.bf16.msra.mxu0 0
        %1311 = vmatprep.subr.bf16.mxu0 0
        %1312 = vmatpush2.bf16.msra.mxu0 0
        %1313 = vmatprep.subr.bf16.mxu0 0
        %1314 = vmatpush2.bf16.msra.mxu0 0
        %1315 = vmatprep.mubr.bf16.mxu0 0
        %1316 = vmatmul.mubr.bf16.gmra.mxu0 %v1281
        %v1317 = vpop.f32.mrf.mxu0
        %v1318 = vadd.f32 0.0, %v1317
        %v1319 = vpop.f32.mrf.mxu0
        %v1320 = vpop.f32.mrf.mxu0
        %v1321 = vpop.f32.mrf.mxu0
        %1322 = vdwg.mxu0
        %v1323 = vadd.f32 %v1058, %v1318
        %1325 = vrot.lane.b32.xlu0 %v1160, 112
        %v1326 = vpop.permute.xlu0 %1325
        %1327 = vrot.lane.b32.xlu0 %v1161, 48
        %v1328 = vpop.permute.xlu0 %1327
        %v1330 = vsel %vm531, %v1326, 0
        %v1333 = vsel %vm531, %v1328, 0
        %1335 = vmatprep.subr.bf16.mxu0 0
        %1336 = vmatpush1.bf16.xpose.msra.mxu0 0
        %1337 = vmatprep.subr.bf16.mxu0 0
        %1338 = vmatpush1.bf16.xpose.msra.mxu0 0
        %1339 = vmatprep.subr.bf16.mxu0 0
        %1340 = vmatpush1.bf16.xpose.msra.mxu0 0
        %1341 = vmatprep.subr.bf16.mxu0 0
        %1342 = vmatpush1.bf16.xpose.msra.mxu0 0
        %1343 = vmatprep.subr.bf16.mxu0 0
        %1344 = vmatpush1.bf16.xpose.msra.mxu0 0
        %1345 = vmatprep.subr.bf16.mxu0 0
        %1346 = vmatpush1.bf16.xpose.msra.mxu0 0
        %1347 = vmatprep.subr.bf16.mxu0 0
        %1348 = vmatpush1.bf16.xpose.msra.mxu0 0
        %1349 = vmatprep.subr.bf16.mxu0 0
        %1350 = vmatpush1.bf16.xpose.msra.mxu0 %v1333
        %1351 = vmatprep.subr.bf16.mxu0 0
        %1352 = vmatpush2.bf16.xpose.msra.mxu0 0
        %1353 = vmatprep.subr.bf16.mxu0 0
        %1354 = vmatpush2.bf16.xpose.msra.mxu0 0
        %1355 = vmatprep.subr.bf16.mxu0 0
        %1356 = vmatpush2.bf16.xpose.msra.mxu0 0
        %1357 = vmatprep.subr.bf16.mxu0 0
        %1358 = vmatpush2.bf16.xpose.msra.mxu0 0
        %1359 = vmatprep.subr.bf16.mxu0 0
        %1360 = vmatpush2.bf16.xpose.msra.mxu0 0
        %1361 = vmatprep.subr.bf16.mxu0 0
        %1362 = vmatpush2.bf16.xpose.msra.mxu0 0
        %1363 = vmatprep.subr.bf16.mxu0 0
        %1364 = vmatpush2.bf16.xpose.msra.mxu0 0
        %1365 = vmatprep.subr.bf16.mxu0 0
        %1366 = vmatpush2.bf16.xpose.msra.mxu0 0
        %1367 = vmatprep.mubr.bf16.mxu0 0
        %1368 = vmatmul.mubr.bf16.gmra.mxu0 %v1330
        %v1369 = vpop.f32.mrf.mxu0
        %v1370 = vadd.f32 %v413, %v1369
        %v1371 = vpop.f32.mrf.mxu0
        %v1372 = vpop.f32.mrf.mxu0
        %v1373 = vpop.f32.mrf.mxu0
        %1374 = vdwg.mxu0
        %v1375 = vsel %vm578, %v1370, -inf
        %1376 = vmax.xlane.f32.xlu0 %v1375
        %v1377 = vpop.xlane.xlu0 %1376
        %v1378 = vsub.f32 %v1370, %v1377
        %v1379 = vmul.f32 %v1378, 1.442695
        %v1380 = vpow.pop %v1379
        %v1381 = vsel %vm578, %v1380, 0.0
        %1382 = vadd.xlane.f32.xlu0 %v1381
        %v1383 = vpop.xlane.xlu0 %1382
        %v1384 = vrcp.pop %v1383
        %v1385 = vmul.f32 %v1380, %v1384
        %v1386 = vpack.c.bf16 %v1385, %v1385
        %1388 = vrot.lane.b32.xlu0 %v1223, 112
        %v1389 = vpop.permute.xlu0 %1388
        %v1391 = vsel %vm578, %v1386, 0
        %v1394 = vsel %vm595, %v1389, 0
        %1396 = vmatprep.subr.bf16.mxu0 0
        %1397 = vmatpush1.bf16.msra.mxu0 0
        %1398 = vmatprep.subr.bf16.mxu0 0
        %1399 = vmatpush1.bf16.msra.mxu0 0
        %1400 = vmatprep.subr.bf16.mxu0 0
        %1401 = vmatpush1.bf16.msra.mxu0 0
        %1402 = vmatprep.subr.bf16.mxu0 0
        %1403 = vmatpush1.bf16.msra.mxu0 0
        %1404 = vmatprep.subr.bf16.mxu0 0
        %1405 = vmatpush1.bf16.msra.mxu0 0
        %1406 = vmatprep.subr.bf16.mxu0 0
        %1407 = vmatpush1.bf16.msra.mxu0 0
        %1408 = vmatprep.subr.bf16.mxu0 0
        %1409 = vmatpush1.bf16.msra.mxu0 0
        %1410 = vmatprep.subr.bf16.mxu0 0
        %1411 = vmatpush1.bf16.msra.mxu0 %v1394
        %1412 = vmatprep.subr.bf16.mxu0 0
        %1413 = vmatpush2.bf16.msra.mxu0 0
        %1414 = vmatprep.subr.bf16.mxu0 0
        %1415 = vmatpush2.bf16.msra.mxu0 0
        %1416 = vmatprep.subr.bf16.mxu0 0
        %1417 = vmatpush2.bf16.msra.mxu0 0
        %1418 = vmatprep.subr.bf16.mxu0 0
        %1419 = vmatpush2.bf16.msra.mxu0 0
        %1420 = vmatprep.subr.bf16.mxu0 0
        %1421 = vmatpush2.bf16.msra.mxu0 0
        %1422 = vmatprep.subr.bf16.mxu0 0
        %1423 = vmatpush2.bf16.msra.mxu0 0
        %1424 = vmatprep.subr.bf16.mxu0 0
        %1425 = vmatpush2.bf16.msra.mxu0 0
        %1426 = vmatprep.subr.bf16.mxu0 0
        %1427 = vmatpush2.bf16.msra.mxu0 0
        %1428 = vmatprep.mubr.bf16.mxu0 0
        %1429 = vmatmul.mubr.bf16.gmra.mxu0 %v1391
        %v1430 = vpop.f32.mrf.mxu0
        %v1431 = vadd.f32 0.0, %v1430
        %v1432 = vpop.f32.mrf.mxu0
        %v1433 = vpop.f32.mrf.mxu0
        %v1434 = vpop.f32.mrf.mxu0
        %1435 = vdwg.mxu0
        %v1436 = vpack.c.bf16 %v1431, %v1431
        %s1437 = scalar_lea.vmem %s6, 24
        %v1438 = vld [vmem:[%s1437] sm:$0xf]
        %v1439 = vld [vmem:[%s1437 + $0x4] sm:$0xf]
        %v1442 = vunpack.c.l.b16 %v1438
        %v1443 = vunpack.c.l.b16 %v1439
        %v1444 = vpack.c.b16 %v1443, %v1442
        %v1447 = vsel %vm531, %v1436, 0
        %1449 = vmatprep.subr.bf16.mxu0 0
        %1450 = vmatpush1.bf16.msra.mxu0 0
        %1451 = vmatprep.subr.bf16.mxu0 0
        %1452 = vmatpush1.bf16.msra.mxu0 0
        %1453 = vmatprep.subr.bf16.mxu0 0
        %1454 = vmatpush1.bf16.msra.mxu0 0
        %1455 = vmatprep.subr.bf16.mxu0 0
        %1456 = vmatpush1.bf16.msra.mxu0 0
        %1457 = vmatprep.subr.bf16.mxu0 0
        %1458 = vmatpush1.bf16.msra.mxu0 0
        %1459 = vmatprep.subr.bf16.mxu0 0
        %1460 = vmatpush1.bf16.msra.mxu0 0
        %1461 = vmatprep.subr.bf16.mxu0 0
        %1462 = vmatpush1.bf16.msra.mxu0 0
        %1463 = vmatprep.subr.bf16.mxu0 0
        %1464 = vmatpush1.bf16.msra.mxu0 %v1444
        %1465 = vmatprep.subr.bf16.mxu0 0
        %1466 = vmatpush2.bf16.msra.mxu0 0
        %1467 = vmatprep.subr.bf16.mxu0 0
        %1468 = vmatpush2.bf16.msra.mxu0 0
        %1469 = vmatprep.subr.bf16.mxu0 0
        %1470 = vmatpush2.bf16.msra.mxu0 0
        %1471 = vmatprep.subr.bf16.mxu0 0
        %1472 = vmatpush2.bf16.msra.mxu0 0
        %1473 = vmatprep.subr.bf16.mxu0 0
        %1474 = vmatpush2.bf16.msra.mxu0 0
        %1475 = vmatprep.subr.bf16.mxu0 0
        %1476 = vmatpush2.bf16.msra.mxu0 0
        %1477 = vmatprep.subr.bf16.mxu0 0
        %1478 = vmatpush2.bf16.msra.mxu0 0
        %1479 = vmatprep.subr.bf16.mxu0 0
        %1480 = vmatpush2.bf16.msra.mxu0 0
        %1481 = vmatprep.mubr.bf16.mxu0 0
        %1482 = vmatmul.mubr.bf16.gmra.mxu0 %v1447
        %v1483 = vpop.f32.mrf.mxu0
        %v1484 = vadd.f32 0.0, %v1483
        %v1485 = vpop.f32.mrf.mxu0
        %v1486 = vpop.f32.mrf.mxu0
        %v1487 = vpop.f32.mrf.mxu0
        %1488 = vdwg.mxu0
        %v1489 = vadd.f32 %v1323, %v1484
        %s1490 = scalar_lea.vmem %s7, 1
        %v1491 = vld [vmem:[%s1490] sm:$0x1]
        %v1492 = vmul.f32 %v1489, %v1489
        %v1493 = vsel %vm416, %v1492, 0.0
        %1494 = vadd.xlane.f32.xlu0 %v1493
        %v1495 = vpop.xlane.xlu0 %1494
        %v1496 = vmul.f32 %v1495, %v420
        %v1497 = vadd.f32 %v1496, 1.1920929e-07
        %v1498 = vrsqrt.pop %v1497
        %v1499 = vmul.f32 %v1489, %v1498
        %v1501 = vlaneseq
        %v1502 = vshrl.u32 %v1501, 7
        %v1503 = vsub.s32 0, %v1502
        %v1504 = vrot.slane %v1491, %v1503
        %v1506 = vmul.f32 %v1499, %v1504
        %v1507 = vpack.c.bf16 %v1506, %v1506
        %s1508 = scalar_lea.vmem %s8, 32
        %v1509 = vld [vmem:[%s1508] sm:$0xff]
        %v1510 = vld [vmem:[%s1508 + $0x8] sm:$0xff]
        %v1511 = vld [vmem:[%s1508 + $0x10] sm:$0xff]
        %v1512 = vld [vmem:[%s1508 + $0x18] sm:$0xff]
        %v1517 = vunpack.c.l.b16 %v1509
        %v1518 = vunpack.c.h.b16 %v1509
        %v1519 = vunpack.c.l.b16 %v1510
        %v1520 = vunpack.c.h.b16 %v1510
        %v1521 = vunpack.c.l.b16 %v1511
        %v1522 = vunpack.c.h.b16 %v1511
        %v1523 = vunpack.c.l.b16 %v1512
        %v1524 = vunpack.c.h.b16 %v1512
        %v1525 = vpack.c.b16 %v1519, %v1517
        %v1526 = vpack.c.b16 %v1520, %v1518
        %v1527 = vpack.c.b16 %v1523, %v1521
        %v1528 = vpack.c.b16 %v1524, %v1522
        %v1534 = vsel %vm416, %v1507, 0
        %1536 = vmatprep.subr.bf16.mxu0 0
        %1537 = vmatpush1.bf16.msra.mxu0 0
        %1538 = vmatprep.subr.bf16.mxu0 0
        %1539 = vmatpush1.bf16.msra.mxu0 0
        %1540 = vmatprep.subr.bf16.mxu0 0
        %1541 = vmatpush1.bf16.msra.mxu0 0
        %1542 = vmatprep.subr.bf16.mxu0 0
        %1543 = vmatpush1.bf16.msra.mxu0 0
        %1544 = vmatprep.subr.bf16.mxu0 0
        %1545 = vmatpush1.bf16.msra.mxu0 0
        %1546 = vmatprep.subr.bf16.mxu0 0
        %1547 = vmatpush1.bf16.msra.mxu0 0
        %1548 = vmatprep.subr.bf16.mxu0 %v1528
        %1549 = vmatpush1.bf16.msra.mxu0 %v1527
        %1550 = vmatprep.subr.bf16.mxu0 %v1526
        %1551 = vmatpush1.bf16.msra.mxu0 %v1525
        %1552 = vmatprep.subr.bf16.mxu0 0
        %1553 = vmatpush2.bf16.msra.mxu0 0
        %1554 = vmatprep.subr.bf16.mxu0 0
        %1555 = vmatpush2.bf16.msra.mxu0 0
        %1556 = vmatprep.subr.bf16.mxu0 0
        %1557 = vmatpush2.bf16.msra.mxu0 0
        %1558 = vmatprep.subr.bf16.mxu0 0
        %1559 = vmatpush2.bf16.msra.mxu0 0
        %1560 = vmatprep.subr.bf16.mxu0 0
        %1561 = vmatpush2.bf16.msra.mxu0 0
        %1562 = vmatprep.subr.bf16.mxu0 0
        %1563 = vmatpush2.bf16.msra.mxu0 0
        %1564 = vmatprep.subr.bf16.mxu0 0
        %1565 = vmatpush2.bf16.msra.mxu0 0
        %1566 = vmatprep.subr.bf16.mxu0 0
        %1567 = vmatpush2.bf16.msra.mxu0 0
        %1568 = vmatprep.mubr.bf16.mxu0 0
        %1569 = vmatmul.mubr.bf16.gmra.mxu0 %v1534
        %v1570 = vpop.f32.mrf.mxu0
        %v1571 = vadd.f32 0.0, %v1570
        %v1572 = vpop.f32.mrf.mxu0
        %v1573 = vadd.f32 0.0, %v1572
        %v1574 = vpop.f32.mrf.mxu0
        %v1575 = vpop.f32.mrf.mxu0
        %1576 = vdwg.mxu0
        %v1577 = vmul.f32 %v1573, 0.5
        %v1578 = vmul.f32 %v1573, 0.044715
        %v1579 = vmul.f32 %v1578, %v1573
        %v1580 = vmul.f32 %v1579, %v1573
        %v1581 = vadd.f32 %v1573, %v1580
        %v1582 = vmul.f32 %v1581, 0.7978846
        %v1583 = vtanh.pop %v1582
        %v1584 = vadd.f32 %v1583, 1.0
        %v1585 = vmul.f32 %v1577, %v1584
        %v1586 = vmul.f32 %v1571, %v1585
        %v1587 = vpack.c.bf16 %v1586, %v1586
        %s1588 = scalar_lea.vmem %s9, 64
        %v1589 = vld [vmem:[%s1588] sm:$0xf]
        %v1590 = vld [vmem:[%s1588 + $0x4] sm:$0xf]
        %v1591 = vld [vmem:[%s1588 + $0x8] sm:$0xf]
        %v1592 = vld [vmem:[%s1588 + $0xc] sm:$0xf]
        %v1593 = vld [vmem:[%s1588 + $0x10] sm:$0xf]
        %v1594 = vld [vmem:[%s1588 + $0x14] sm:$0xf]
        %v1595 = vld [vmem:[%s1588 + $0x18] sm:$0xf]
        %v1596 = vld [vmem:[%s1588 + $0x1c] sm:$0xf]
        %v1597 = vld [vmem:[%s1588 + $0x20] sm:$0xf]
        %v1598 = vld [vmem:[%s1588 + $0x24] sm:$0xf]
        %v1599 = vld [vmem:[%s1588 + $0x28] sm:$0xf]
        %v1600 = vld [vmem:[%s1588 + $0x2c] sm:$0xf]
        %v1601 = vld [vmem:[%s1588 + $0x30] sm:$0xf]
        %v1602 = vld [vmem:[%s1588 + $0x34] sm:$0xf]
        %v1603 = vld [vmem:[%s1588 + $0x38] sm:$0xf]
        %v1604 = vld [vmem:[%s1588 + $0x3c] sm:$0xf]
        %v1621 = vunpack.c.l.b16 %v1589
        %v1622 = vunpack.c.l.b16 %v1590
        %v1623 = vunpack.c.l.b16 %v1591
        %v1624 = vunpack.c.l.b16 %v1592
        %v1625 = vunpack.c.l.b16 %v1593
        %v1626 = vunpack.c.l.b16 %v1594
        %v1627 = vunpack.c.l.b16 %v1595
        %v1628 = vunpack.c.l.b16 %v1596
        %v1629 = vunpack.c.l.b16 %v1597
        %v1630 = vunpack.c.l.b16 %v1598
        %v1631 = vunpack.c.l.b16 %v1599
        %v1632 = vunpack.c.l.b16 %v1600
        %v1633 = vunpack.c.l.b16 %v1601
        %v1634 = vunpack.c.l.b16 %v1602
        %v1635 = vunpack.c.l.b16 %v1603
        %v1636 = vunpack.c.l.b16 %v1604
        %v1637 = vpack.c.b16 %v1622, %v1621
        %v1638 = vpack.c.b16 %v1624, %v1623
        %v1639 = vpack.c.b16 %v1626, %v1625
        %v1640 = vpack.c.b16 %v1628, %v1627
        %v1641 = vpack.c.b16 %v1630, %v1629
        %v1642 = vpack.c.b16 %v1632, %v1631
        %v1643 = vpack.c.b16 %v1634, %v1633
        %v1644 = vpack.c.b16 %v1636, %v1635
        %1653 = vmatprep.subr.bf16.mxu0 0
        %1654 = vmatpush1.bf16.msra.mxu0 %v1644
        %1655 = vmatprep.subr.bf16.mxu0 0
        %1656 = vmatpush1.bf16.msra.mxu0 %v1643
        %1657 = vmatprep.subr.bf16.mxu0 0
        %1658 = vmatpush1.bf16.msra.mxu0 %v1642
        %1659 = vmatprep.subr.bf16.mxu0 0
        %1660 = vmatpush1.bf16.msra.mxu0 %v1641
        %1661 = vmatprep.subr.bf16.mxu0 0
        %1662 = vmatpush1.bf16.msra.mxu0 %v1640
        %1663 = vmatprep.subr.bf16.mxu0 0
        %1664 = vmatpush1.bf16.msra.mxu0 %v1639
        %1665 = vmatprep.subr.bf16.mxu0 0
        %1666 = vmatpush1.bf16.msra.mxu0 %v1638
        %1667 = vmatprep.subr.bf16.mxu0 0
        %1668 = vmatpush1.bf16.msra.mxu0 %v1637
        %1669 = vmatprep.subr.bf16.mxu0 0
        %1670 = vmatpush2.bf16.msra.mxu0 0
        %1671 = vmatprep.subr.bf16.mxu0 0
        %1672 = vmatpush2.bf16.msra.mxu0 0
        %1673 = vmatprep.subr.bf16.mxu0 0
        %1674 = vmatpush2.bf16.msra.mxu0 0
        %1675 = vmatprep.subr.bf16.mxu0 0
        %1676 = vmatpush2.bf16.msra.mxu0 0
        %1677 = vmatprep.subr.bf16.mxu0 0
        %1678 = vmatpush2.bf16.msra.mxu0 0
        %1679 = vmatprep.subr.bf16.mxu0 0
        %1680 = vmatpush2.bf16.msra.mxu0 0
        %1681 = vmatprep.subr.bf16.mxu0 0
        %1682 = vmatpush2.bf16.msra.mxu0 0
        %1683 = vmatprep.subr.bf16.mxu0 0
        %1684 = vmatpush2.bf16.msra.mxu0 0
        %1685 = vmatprep.mubr.bf16.mxu0 0
        %1686 = vmatmul.mubr.bf16.gmra.mxu0 %v1587
        %v1687 = vpop.f32.mrf.mxu0
        %v1688 = vadd.f32 0.0, %v1687
        %v1689 = vpop.f32.mrf.mxu0
        %v1690 = vpop.f32.mrf.mxu0
        %v1691 = vpop.f32.mrf.mxu0
        %1692 = vdwg.mxu0
        %v1693 = vadd.f32 %v1489, %v1688
        %v1694 = vld [vmem:[%s10] sm:$0x1]
        %v1695 = vmul.f32 %v1693, %v1693
        %v1696 = vsel %vm416, %v1695, 0.0
        %1697 = vadd.xlane.f32.xlu0 %v1696
        %v1698 = vpop.xlane.xlu0 %1697
        %v1699 = vmul.f32 %v1698, %v420
        %v1700 = vadd.f32 %v1699, 1.1920929e-07
        %v1701 = vrsqrt.pop %v1700
        %v1702 = vmul.f32 %v1693, %v1701
        %v1704 = vlaneseq
        %v1705 = vshrl.u32 %v1704, 7
        %v1706 = vsub.s32 0, %v1705
        %v1707 = vrot.slane %v1694, %v1706
        %v1709 = vmul.f32 %v1702, %v1707
        %v1710 = vpack.c.bf16 %v1709, %v1709
        %v1711 = vld [vmem:[%s11] sm:$0xf]
        %v1712 = vld [vmem:[%s11 + $0x4] sm:$0xf]
        %v1713 = vld [vmem:[%s11 + $0x8] sm:$0xf]
        %v1714 = vld [vmem:[%s11 + $0xc] sm:$0xf]
        %v1719 = vunpack.c.l.b16 %v1711
        %v1720 = vunpack.c.l.b16 %v1712
        %v1721 = vunpack.c.l.b16 %v1713
        %v1722 = vunpack.c.l.b16 %v1714
        %v1723 = vpack.c.b16 %v1720, %v1719
        %v1724 = vpack.c.b16 %v1722, %v1721
        %v1728 = vsel %vm416, %v1710, 0
        %1730 = vmatprep.subr.bf16.mxu0 0
        %1731 = vmatpush1.bf16.msra.mxu0 0
        %1732 = vmatprep.subr.bf16.mxu0 0
        %1733 = vmatpush1.bf16.msra.mxu0 0
        %1734 = vmatprep.subr.bf16.mxu0 0
        %1735 = vmatpush1.bf16.msra.mxu0 0
        %1736 = vmatprep.subr.bf16.mxu0 0
        %1737 = vmatpush1.bf16.msra.mxu0 0
        %1738 = vmatprep.subr.bf16.mxu0 0
        %1739 = vmatpush1.bf16.msra.mxu0 0
        %1740 = vmatprep.subr.bf16.mxu0 0
        %1741 = vmatpush1.bf16.msra.mxu0 0
        %1742 = vmatprep.subr.bf16.mxu0 0
        %1743 = vmatpush1.bf16.msra.mxu0 %v1724
        %1744 = vmatprep.subr.bf16.mxu0 0
        %1745 = vmatpush1.bf16.msra.mxu0 %v1723
        %1746 = vmatprep.subr.bf16.mxu0 0
        %1747 = vmatpush2.bf16.msra.mxu0 0
        %1748 = vmatprep.subr.bf16.mxu0 0
        %1749 = vmatpush2.bf16.msra.mxu0 0
        %1750 = vmatprep.subr.bf16.mxu0 0
        %1751 = vmatpush2.bf16.msra.mxu0 0
        %1752 = vmatprep.subr.bf16.mxu0 0
        %1753 = vmatpush2.bf16.msra.mxu0 0
        %1754 = vmatprep.subr.bf16.mxu0 0
        %1755 = vmatpush2.bf16.msra.mxu0 0
        %1756 = vmatprep.subr.bf16.mxu0 0
        %1757 = vmatpush2.bf16.msra.mxu0 0
        %1758 = vmatprep.subr.bf16.mxu0 0
        %1759 = vmatpush2.bf16.msra.mxu0 0
        %1760 = vmatprep.subr.bf16.mxu0 0
        %1761 = vmatpush2.bf16.msra.mxu0 0
        %1762 = vmatprep.mubr.bf16.mxu0 0
        %1763 = vmatmul.mubr.bf16.gmra.mxu0 %v1728
        %v1764 = vpop.f32.mrf.mxu0
        %v1765 = vadd.f32 0.0, %v1764
        %v1766 = vpop.f32.mrf.mxu0
        %v1767 = vpop.f32.mrf.mxu0
        %v1768 = vpop.f32.mrf.mxu0
        %1769 = vdwg.mxu0
        %1770 = vst [vmem:[%s404] sm:$0xff] %v1765
        %s1771 = sand.u32 %s291, 1
        %s1772 = scalar_lea.sflag [#allocation3], %s1771
        %s1773 = sand.u32 %s291, 1
        %s1774 = smul.addr %s1773, 8
        %s1775 = scalar_lea.vmem [#allocation2], %s1774
        // Predicated region
        $region69: #{transformer_forward.1} parent=67 // pred_check
          %p1776 = pneg %p301
        $region70: #{transformer_forward.1} parent=67 // pred_check_branch
          %1778 = sbr.rel (%p1776) target = $region72
        $region71: #{transformer_forward.1} parent=67 // pred_region
          %s1780 = ssub.s32 128, 128
          %1781 = vsyncadd %s1772, %s1780
          %s1782 = smul.addr %s26, 128
          %s1783 = scalar_lea.hbm %s12, %s1782
          %s1785 = sshll.u32 %s1775, 4
          %s1786 = int_to_ptr.vmem [resolvable:$true] %s1785
          %1788 = dma.vmem_to_hbm [thread:$0]  %s1786, 128, %s1783, %s1772
        $region72: #{transformer_forward.1} parent=67 // pred_fallthru
          _
      $region68: #{transformer_forward.1} parent=5 // pred_fallthru
        _
      %p1789 = scmp.le.s32.totalorder 2, %s21
      // Predicated region
      $region73: #{transformer_forward.1} parent=5 // pred_check
        %p1790 = pneg %p1789
      $region74: #{transformer_forward.1} parent=5 // pred_check_branch
        %1792 = sbr.rel (%p1790) target = $region76
      $region75: #{transformer_forward.1} parent=5 // pred_region
        %s1793 = ssub.s32 %s21, 2
        // Predicated region
        $region77: #{transformer_forward.1} parent=75 // pred_check
          %p1794 = pneg %p307
        $region78: #{transformer_forward.1} parent=75 // pred_check_branch
          %1796 = sbr.rel (%p1794) target = $region80
        $region79: #{transformer_forward.1} parent=75 // pred_region
          %s1797 = sand.u32 %s292, 1
          %s1798 = scalar_lea.sflag [#allocation3], %s1797
          %s1799 = sand.u32 %s292, 1
          %s1800 = smul.addr %s1799, 8
          %s1801 = scalar_lea.vmem [#allocation2], %s1800
          %1802 = dma.done %s1798, 128
        $region80: #{transformer_forward.1} parent=75 // pred_fallthru
          _
      $region76: #{transformer_forward.1} parent=5 // pred_fallthru
        _
    $region6: #{transformer_forward.1} parent=1 // loop_footer
      %s25 = sadd.s32 1, %s21
    $region7: #{transformer_forward.1} parent=1 // loop_footer_branch
      %20 = sbr.rel target = $region3
    $region8: #{transformer_forward.1} parent=1 // loop_exit
      _
    %1803 = vsyncpa [#allocation3], 1
    %s1804 = scalar_lea.sflag [#allocation3], 1
    %1805 = vsyncpa %s1804, 1

</llo_original>
